<compile_context>
chip_gen: v7x
topology: tpu7x:2x2x1
jax: 0.10.0
libtpu: 0.0.40
codegen_flags: <defaults>
</compile_context>

<pallas_src>
import functools
import math

import jax
import jax.numpy as jnp
from jax import lax
from jax.experimental import pallas as pl
from jax.experimental.pallas import tpu as pltpu


# ----------------------------------------------------------------------------
# Lazy, cached capability probe for single-buffered grid-invariant operands.
# Compile-only (never executed), run on first use rather than at import.
# ----------------------------------------------------------------------------
_SINGLE_BUF_CACHE = []


def _get_single_buffer_mode():
    if _SINGLE_BUF_CACHE:
        return _SINGLE_BUF_CACHE[0]
    mode = None
    if hasattr(pl, "Buffered"):
        try:
            cand = pl.Buffered(1)

            def _k(x_ref, o_ref):
                o_ref[...] = x_ref[...] + 1.0

            f = pl.pallas_call(
                _k,
                out_shape=jax.ShapeDtypeStruct((8, 128), jnp.float32),
                grid=(2,),
                in_specs=[pl.BlockSpec((8, 128), lambda i: (0, 0),
                                       pipeline_mode=cand)],
                out_specs=pl.BlockSpec((8, 128), lambda i: (0, 0)),
            )
            # Compile only: catches Mosaic rejection of pipeline_mode without
            # executing anything on the device.
            jax.jit(f).lower(
                jax.ShapeDtypeStruct((8, 128), jnp.float32)).compile()
            mode = cand
        except Exception:  # pragma: no cover - defensive fallback
            mode = None
    _SINGLE_BUF_CACHE.append(mode)
    return mode


def _const_spec(shape, mode):
    """BlockSpec for a grid-invariant operand (single-buffered when supported)."""
    zeros = (0,) * len(shape)

    def index_map(i):
        return zeros

    if mode is not None:
        return pl.BlockSpec(shape, index_map, pipeline_mode=mode)
    return pl.BlockSpec(shape, index_map)


def _vmem_capacity_bytes():
    try:
        info = pltpu.get_tpu_info()
        for attr in ("vmem_capacity_bytes", "vmem_bytes", "vmem_size_bytes"):
            v = getattr(info, attr, None)
            if v:
                return int(v)
    except Exception:  # pragma: no cover - defensive fallback
        pass
    return 128 * 2 ** 20   # v5e/v6e physical VMEM


def _padded_nbytes(shape, itemsize):
    """VMEM-resident size: last dim padded to 128 lanes, 2nd-last to 8 sublanes."""
    if len(shape) >= 2:
        shape = tuple(shape[:-2]) + (
            -(-shape[-2] // 8) * 8, -(-shape[-1] // 128) * 128)
    return math.prod(shape) * itemsize


# ----------------------------------------------------------------------------
# Kernel 1: random-walk core. grid=(max_step,); scratch carries the recurrence.
# ----------------------------------------------------------------------------
def _rw_core_kernel(x0_ref, wfc_ref, bfc_ref, z0_ref, adjbd_ref, p_ref,
                    wrw_ref, brw_ref, onehot_t_ref,
                    tg_ref,
                    x_scr, z_scr, zx_scr):
    step = pl.program_id(0)
    bf16 = jnp.bfloat16
    f32 = jnp.float32

    @pl.when(step == 0)
    def _init():
        # x = sigmoid(fc(x0)); bf16 MXU operands, f32 accumulation.
        h = lax.dot_general(x0_ref[...], wfc_ref[...],
                            (((1,), (0,)), ((), ())),
                            preferred_element_type=f32) + bfc_ref[...]
        x = jax.nn.sigmoid(h)
        x_scr[...] = x.astype(bf16)
        z_scr[...] = z0_ref[...]
        # zx (transposed, [N, H*S]): zx[n, hs] = sum_d z0[hs, d] * x[n, d]
        zx = lax.dot_general(x.astype(bf16), z0_ref[...].astype(bf16),
                             (((1,), (1,)), ((), ())),
                             preferred_element_type=f32)
        zx_scr[...] = zx.astype(bf16)
        # Step 0: t == zx (the reference `eye @ z` branch), so zx*t == zx**2 —
        # the redundant [N,D]x[D,HS] matmul is skipped.
        prod = zx * zx
        tg_ref[...] = lax.dot_general(onehot_t_ref[...], prod.astype(bf16),
                                      (((1,), (0,)), ((), ())),
                                      preferred_element_type=f32)

    @pl.when(step > 0)
    def _advance():
        d = wrw_ref.shape[1]
        hs = z_scr.shape[0]

        # z = adj_hidden_norm @ z  (block-diagonal over hidden graphs; tiny).
        z_new = lax.dot_general(adjbd_ref[...], z_scr[...].astype(bf16),
                                (((1,), (0,)), ((), ())),
                                preferred_element_type=f32)
        z_scr[...] = z_new
        zb = z_new.astype(bf16)

        # Dominant matmul: agg = P @ current_x (current_x already bf16 in scratch).
        agg = lax.dot_general(p_ref[...], x_scr[...],
                              (((1,), (0,)), ((), ())),
                              preferred_element_type=f32)

        # Fused RHS [W | W @ z_new^T] -> one (N, D+HS) matmul producing both the
        # RWConv linear output (lanes 0:D) and t = new_x @ z_new^T (lanes D:D+HS).
        wz = lax.dot_general(wrw_ref[...], zb, (((1,), (1,)), ((), ())),
                             preferred_element_type=f32)
        rhs = jnp.concatenate([wrw_ref[...], wz.astype(bf16)], axis=1)
        combined = lax.dot_general(agg.astype(bf16), rhs,
                                   (((1,), (0,)), ((), ())),
                                   preferred_element_type=f32)
        bz = lax.dot_general(brw_ref[...], z_new, (((1,), (1,)), ((), ())),
                             preferred_element_type=f32)          # (1, HS), f32
        new_x = combined[:, 0:d] + brw_ref[...]
        t = combined[:, d:d + hs] + bz
        x_scr[...] = new_x.astype(bf16)

        prod = zx_scr[...].astype(f32) * t
        # Per-graph pooled features, graph-major [G, H*S]: scatter-add of node rows
        # into graphs expressed as one matmul with the transposed one-hot matrix.
        tg_ref[...] = lax.dot_general(onehot_t_ref[...], prod.astype(bf16),
                                      (((1,), (0,)), ((), ())),
                                      preferred_element_type=f32)


def rw_core(x0, wfc, bfc, z0_2d, adjbd, p_mat, wrw_stack, brw_stack, onehot_t,
            max_step):
    n, d_in = x0.shape
    hs, d = z0_2d.shape
    g = onehot_t.shape[0]

    single_buf = _get_single_buffer_mode()

    in_specs = [
        _const_spec((n, d_in), single_buf),     # x0          (bf16)
        _const_spec((d_in, d), single_buf),     # fc weight   (bf16)
        _const_spec((1, d), single_buf),        # fc bias     (f32)
        _const_spec((hs, d), single_buf),       # z0          (f32)
        _const_spec((hs, hs), single_buf),      # adj blkdiag (bf16)
        _const_spec((n, n), single_buf),        # P           (bf16)
        pl.BlockSpec((None, d, d), lambda i: (i, 0, 0)),   # W_rw for this step
        pl.BlockSpec((None, 1, d), lambda i: (i, 0, 0)),   # b_rw for this step
        _const_spec((g, n), single_buf),        # one-hot^T   (bf16)
    ]

    # VMEM budget from the real (padded) resident footprint, with headroom below
    # the physical per-core capacity (64 MiB on v7x, 128 MiB on v5e/v6e).
    const_bufs = 1 if single_buf is not None else 2
    const_bytes = (_padded_nbytes((n, d_in), 2) + _padded_nbytes((d_in, d), 2)
                   + _padded_nbytes((1, d), 4) + _padded_nbytes((hs, d), 4)
                   + _padded_nbytes((hs, hs), 2) + _padded_nbytes((n, n), 2)
                   + _padded_nbytes((g, n), 2))
    step_bytes = 2 * (_padded_nbytes((d, d), 2) + _padded_nbytes((1, d), 4)
                      + _padded_nbytes((g, hs), 4))
    scratch_bytes = (_padded_nbytes((n, d), 2) + _padded_nbytes((hs, d), 4)
                     + _padded_nbytes((n, hs), 2))
    vmem_needed = const_bufs * const_bytes + step_bytes + scratch_bytes
    cap = _vmem_capacity_bytes() - 8 * 2 ** 20
    vmem_limit = int(min(cap, max(32 * 2 ** 20, 2 * vmem_needed + 8 * 2 ** 20)))

    grid_spec = pltpu.PrefetchScalarGridSpec(
        num_scalar_prefetch=0,
        grid=(max_step,),
        in_specs=in_specs,
        out_specs=pl.BlockSpec((None, g, hs), lambda i: (i, 0, 0)),
        scratch_shapes=[
            pltpu.VMEM((n, d), jnp.bfloat16),    # current_x (bf16 recurrence state)
            pltpu.VMEM((hs, d), jnp.float32),    # z
            pltpu.VMEM((n, hs), jnp.bfloat16),   # zx (transposed)
        ],
    )
    return pl.pallas_call(
        _rw_core_kernel,
        out_shape=jax.ShapeDtypeStruct((max_step, g, hs), jnp.float32),
        grid_spec=grid_spec,
        compiler_params=pltpu.CompilerParams(
            dimension_semantics=("arbitrary",),   # sequential recurrence axis
            vmem_limit_bytes=vmem_limit),
    )(x0, wfc, bfc, z0_2d, adjbd, p_mat, wrw_stack, brw_stack, onehot_t)


# ----------------------------------------------------------------------------
# Kernel 2: BatchNorm1d (batch stats) + fc1 + relu + fc2 + log_softmax.
# ----------------------------------------------------------------------------
def _head_kernel(f_ref, w1_ref, b1_ref, w2_ref, b2_ref, o_ref):
    f = f_ref[...]
    # Freshly created BatchNorm1d (training mode, gamma=1, beta=0, eps=1e-5):
    mean = jnp.mean(f, axis=0, keepdims=True)
    var = jnp.mean((f - mean) ** 2, axis=0, keepdims=True)   # biased variance
    fn = (f - mean) * lax.rsqrt(var + 1e-5)

    h = lax.dot_general(fn, w1_ref[...], (((1,), (0,)), ((), ())),
                        preferred_element_type=jnp.float32) + b1_ref[...]
    h = jnp.maximum(h, 0.0)
    logits = lax.dot_general(h, w2_ref[...], (((1,), (0,)), ((), ())),
                             preferred_element_type=jnp.float32) + b2_ref[...]
    m = jnp.max(logits, axis=1, keepdims=True)
    lse = jnp.log(jnp.sum(jnp.exp(logits - m), axis=1, keepdims=True)) + m
    o_ref[...] = logits - lse


def head(feat, w1, b1, w2, b2):
    g, f = feat.shape
    pen = w1.shape[1]
    c = w2.shape[1]
    grid_spec = pltpu.PrefetchScalarGridSpec(
        num_scalar_prefetch=0,
        grid=(1,),
        in_specs=[
            pl.BlockSpec((g, f), lambda i: (0, 0)),
            pl.BlockSpec((f, pen), lambda i: (0, 0)),
            pl.BlockSpec((1, pen), lambda i: (0, 0)),
            pl.BlockSpec((pen, c), lambda i: (0, 0)),
            pl.BlockSpec((1, c), lambda i: (0, 0)),
        ],
        out_specs=pl.BlockSpec((g, c), lambda i: (0, 0)),
    )
    return pl.pallas_call(
        _head_kernel,
        out_shape=jax.ShapeDtypeStruct((g, c), jnp.float32),
        grid_spec=grid_spec,
        compiler_params=pltpu.CompilerParams(
            dimension_semantics=("arbitrary",)),
    )(feat, w1, b1, w2, b2)


# ----------------------------------------------------------------------------
# Plain-JAX glue: graph preprocessing (built once per graph), parameter plumbing.
# ----------------------------------------------------------------------------
def build_propagation_matrix(edge_index, num_nodes):
    """Dense RWConv propagation: aggr = P @ x with P[col,row] += 1/deg[row]."""
    loops = jnp.stack([jnp.arange(num_nodes), jnp.arange(num_nodes)])
    ei = jnp.concatenate([edge_index, loops], axis=1)
    row, col = ei[0], ei[1]
    deg = jnp.zeros((num_nodes,), jnp.float32).at[row].add(1.0)
    deg_inv = jnp.where(deg == 0.0, 0.0, 1.0 / deg)
    p = jnp.zeros((num_nodes, num_nodes), jnp.float32).at[col, row].add(deg_inv[row])
    return p


def preprocess_graph(edge_index, batch, num_nodes, n_graphs):
    """Graph-dependent dense operands; build once per (edge_index, batch), reuse
    across every forward call (avoids rebuilding the N x N scatter each step)."""
    p_mat = build_propagation_matrix(edge_index, num_nodes).astype(jnp.bfloat16)
    onehot_t = (batch[None, :] == jnp.arange(n_graphs)[:, None]).astype(jnp.float32)
    counts = jnp.sum(onehot_t, axis=1)
    return dict(p_mat=p_mat, onehot_t=onehot_t.astype(jnp.bfloat16), counts=counts)


def rw_gnn_forward(params, x, graph, *, max_step, hidden_graphs,
                   size_hidden_graphs, n_graphs, normalize=False):
    H, S = hidden_graphs, size_hidden_graphs
    D = params["features_hidden"].shape[-1]
    T, G = max_step, n_graphs

    # adj_hidden_norm: symmetric [H, S, S] from relu of the upper-triangle params,
    # laid out block-diagonally so the batched-over-H matmul is one 2-D dot.
    iu, ju = jnp.triu_indices(S, k=1)
    adj = jnp.zeros((H, S, S), jnp.float32)
    adj = adj.at[:, iu, ju].set(jax.nn.relu(params["adj_hidden"]))
    adj = adj + jnp.transpose(adj, (0, 2, 1))
    adjbd = jnp.zeros((H * S, H * S), jnp.float32)
    for h in range(H):
        adjbd = adjbd.at[h * S:(h + 1) * S, h * S:(h + 1) * S].set(adj[h])

    z0_2d = params["features_hidden"].reshape(H * S, D)

    bf16 = jnp.bfloat16
    tg = rw_core(x.astype(bf16), params["wfc"].astype(bf16),
                 params["bfc"][None, :], z0_2d, adjbd.astype(bf16),
                 graph["p_mat"],
                 params["wrw_stack"].astype(bf16), params["brw_stack"],
                 graph["onehot_t"], max_step)
    # tg: [max_step, G, H*S] (graph-major, lane dim = H*S)

    # Vectorized over the step axis: per-step [H,S,G] -> [S,G,H] -> raw reshape to
    # [G, S*H] and the concat over steps, all as one transpose+reshape chain.
    t_thsg = jnp.transpose(tg, (0, 2, 1)).reshape(T, H, S, G)
    if normalize:
        # Faithful to the reference broadcasting (requires S == n_graphs).
        norm = jnp.tile(graph["counts"][:, None], (1, H))            # [G, H]
        t_tshg = jnp.transpose(t_thsg, (0, 2, 1, 3)) / norm[None, :, :, None]
        t_tsgh = jnp.transpose(t_tshg, (0, 1, 3, 2))                 # [T,S,G,H]
    else:
        t_tsgh = jnp.transpose(t_thsg, (0, 2, 3, 1))                 # [T,S,G,H]
    feat = jnp.transpose(t_tsgh.reshape(T, G, S * H), (1, 0, 2)).reshape(G, T * S * H)

    return head(feat, params["w1"], params["b1"][None, :],
                params["w2"], params["b2"][None, :])


def init_params(key, *, input_dim, max_step, hidden_graphs, size_hidden_graphs,
                hidden_dim, penultimate_dim, num_classes):
    H, S, D = hidden_graphs, size_hidden_graphs, hidden_dim
    F = max_step * S * H
    ks = jax.random.split(key, 10)
    u = lambda k, shape, lo, hi: jax.random.uniform(k, shape, jnp.float32, lo, hi)

    wrw = u(ks[4], (max_step, D, D), -0.1, 0.1)
    wrw = wrw.at[0].set(0.0)          # slot 0 unused (step 0 has no RWConv)
    brw = u(ks[5], (max_step, 1, D), -0.1, 0.1)
    brw = brw.at[0].set(0.0)

    return dict(
        adj_hidden=u(ks[0], (H, S * (S - 1) // 2), -1.0, 1.0),
        features_hidden=u(ks[1], (H, S, D), 0.0, 1.0),
        wfc=u(ks[2], (input_dim, D), -0.1, 0.1),
        bfc=u(ks[3], (D,), -0.1, 0.1),
        wrw_stack=wrw,
        brw_stack=brw,
        w1=u(ks[6], (F, penultimate_dim), -0.1, 0.1),
        b1=u(ks[7], (penultimate_dim,), -0.1, 0.1),
        w2=u(ks[8], (penultimate_dim, num_classes), -0.1, 0.1),
        b2=u(ks[9], (num_classes,), -0.1, 0.1),
    )


if __name__ == "__main__":
    # Small synthetic graph batch.
    input_dim = 8
    max_step = 3
    hidden_graphs = 4
    size_hidden_graphs = 6
    hidden_dim = 32
    penultimate_dim = 16
    num_classes = 3

    N, G, E = 20, 3, 40

    key = jax.random.PRNGKey(0)
    k_x, k_src, k_dst, k_param = jax.random.split(key, 4)

    x = jax.random.normal(k_x, (N, input_dim), jnp.float32)
    src = jax.random.randint(k_src, (E,), 0, N)
    dst = jax.random.randint(k_dst, (E,), 0, N)
    edge_index = jnp.stack([src, dst]).astype(jnp.int32)
    batch = jnp.array([0] * 7 + [1] * 7 + [2] * 6, jnp.int32)   # n_graphs = 3

    params = init_params(
        k_param, input_dim=input_dim, max_step=max_step,
        hidden_graphs=hidden_graphs, size_hidden_graphs=size_hidden_graphs,
        hidden_dim=hidden_dim, penultimate_dim=penultimate_dim,
        num_classes=num_classes)

    # Graph-dependent operands built once and reused for every forward call.
    graph_data = preprocess_graph(edge_index, batch, N, G)

    fwd = jax.jit(functools.partial(
        rw_gnn_forward, max_step=max_step, hidden_graphs=hidden_graphs,
        size_hidden_graphs=size_hidden_graphs, n_graphs=G, normalize=False))

    log_probs = fwd(params, x, graph_data)
    jax.block_until_ready(log_probs)
    assert log_probs.shape == (G, num_classes)
    print("KERNEL_OK")
</pallas_src>

<mosaic_0001>
module attributes {stable_mosaic.version = 11 : i64} {
  func.func @_rw_core_kernel(%arg0: i32, %arg1: memref<20x8xbf16, #tpu.memory_space<vmem>>, %arg2: memref<8x32xbf16, #tpu.memory_space<vmem>>, %arg3: memref<1x32xf32, #tpu.memory_space<vmem>>, %arg4: memref<24x32xf32, #tpu.memory_space<vmem>>, %arg5: memref<24x24xbf16, #tpu.memory_space<vmem>>, %arg6: memref<20x20xbf16, #tpu.memory_space<vmem>>, %arg7: memref<1x32x32xbf16, #tpu.memory_space<vmem>>, %arg8: memref<1x1x32xf32, #tpu.memory_space<vmem>>, %arg9: memref<3x20xbf16, #tpu.memory_space<vmem>>, %arg10: memref<1x3x24xf32, #tpu.memory_space<vmem>>, %arg11: memref<20x32xbf16, #tpu.memory_space<vmem>>, %arg12: memref<24x32xf32, #tpu.memory_space<vmem>>, %arg13: memref<20x24xbf16, #tpu.memory_space<vmem>>) attributes {dimension_semantics = [#tpu.dimension_semantics<arbitrary>], iteration_bounds = array<i64: 3>, scalar_prefetch = 0 : i64, scratch_operands = 3 : i64, tpu.core_type = #tpu.core_type<tc>, window_params = [{pipeline_mode = #tpu.pipeline_mode<synchronous>, transform_indices = @transform_0, window_bounds = array<i64: 20, 8>}, {pipeline_mode = #tpu.pipeline_mode<synchronous>, transform_indices = @transform_1, window_bounds = array<i64: 8, 32>}, {pipeline_mode = #tpu.pipeline_mode<synchronous>, transform_indices = @transform_2, window_bounds = array<i64: 1, 32>}, {pipeline_mode = #tpu.pipeline_mode<synchronous>, transform_indices = @transform_3, window_bounds = array<i64: 24, 32>}, {pipeline_mode = #tpu.pipeline_mode<synchronous>, transform_indices = @transform_4, window_bounds = array<i64: 24, 24>}, {pipeline_mode = #tpu.pipeline_mode<synchronous>, transform_indices = @transform_5, window_bounds = array<i64: 20, 20>}, {transform_indices = @transform_6, window_bounds = array<i64: 1, 32, 32>}, {transform_indices = @transform_7, window_bounds = array<i64: 1, 1, 32>}, {pipeline_mode = #tpu.pipeline_mode<synchronous>, transform_indices = @transform_8, window_bounds = array<i64: 3, 20>}, {transform_indices = @transform_9, window_bounds = array<i64: 1, 3, 24>}]} {
    %c0_i32 = arith.constant 0 : i32
    %0 = arith.cmpi eq, %arg0, %c0_i32 : i32
    %1 = arith.extui %0 : i1 to i32
    %c0_i32_0 = arith.constant 0 : i32
    %2 = arith.cmpi ne, %1, %c0_i32_0 : i32
    scf.if %2 {
      %c0 = arith.constant 0 : index
      %c0_3 = arith.constant 0 : index
      %6 = vector.load %arg1[%c0, %c0_3] : memref<20x8xbf16, #tpu.memory_space<vmem>>, vector<20x8xbf16>
      %c0_4 = arith.constant 0 : index
      %c0_5 = arith.constant 0 : index
      %7 = vector.load %arg2[%c0_4, %c0_5] : memref<8x32xbf16, #tpu.memory_space<vmem>>, vector<8x32xbf16>
      %cst = arith.constant dense<0.000000e+00> : vector<20x32xf32>
      %8 = tpu.matmul %6, %7, %cst {dimension_numbers = #tpu.dot_dimension_numbers<[1], [0], [0], [1], [0, 0, 1, 1], [], []>} : vector<20x8xbf16>, vector<8x32xbf16>, vector<20x32xf32> -> vector<20x32xf32>
      %c0_6 = arith.constant 0 : index
      %c0_7 = arith.constant 0 : index
      %9 = vector.load %arg3[%c0_6, %c0_7] : memref<1x32xf32, #tpu.memory_space<vmem>>, vector<1x32xf32>
      %10 = vector.broadcast %9 : vector<1x32xf32> to vector<20x32xf32>
      %11 = arith.addf %8, %10 : vector<20x32xf32>
      %12 = arith.negf %11 : vector<20x32xf32>
      %13 = math.exp %12 : vector<20x32xf32>
      %cst_8 = arith.constant 1.000000e+00 : f32
      %14 = vector.broadcast %cst_8 : f32 to vector<20x32xf32>
      %15 = arith.addf %14, %13 : vector<20x32xf32>
      %16 = arith.divf %14, %15 : vector<20x32xf32>
      %17 = arith.truncf %16 : vector<20x32xf32> to vector<20x32xbf16>
      %c0_9 = arith.constant 0 : index
      %c0_10 = arith.constant 0 : index
      %18 = vector.load %arg11[%c0_9, %c0_10] : memref<20x32xbf16, #tpu.memory_space<vmem>>, vector<20x32xbf16>
      tpu.vector_store %arg11[%c0_9, %c0_10], %17 {strides = array<i32>} : memref<20x32xbf16, #tpu.memory_space<vmem>>, vector<20x32xbf16>,
      %c0_11 = arith.constant 0 : index
      %c0_12 = arith.constant 0 : index
      %19 = vector.load %arg4[%c0_11, %c0_12] : memref<24x32xf32, #tpu.memory_space<vmem>>, vector<24x32xf32>
      %c0_13 = arith.constant 0 : index
      %c0_14 = arith.constant 0 : index
      %20 = vector.load %arg12[%c0_13, %c0_14] : memref<24x32xf32, #tpu.memory_space<vmem>>, vector<24x32xf32>
      tpu.vector_store %arg12[%c0_13, %c0_14], %19 {strides = array<i32>} : memref<24x32xf32, #tpu.memory_space<vmem>>, vector<24x32xf32>,
      %21 = arith.truncf %16 : vector<20x32xf32> to vector<20x32xbf16>
      %c0_15 = arith.constant 0 : index
      %c0_16 = arith.constant 0 : index
      %22 = vector.load %arg4[%c0_15, %c0_16] : memref<24x32xf32, #tpu.memory_space<vmem>>, vector<24x32xf32>
      %23 = arith.truncf %22 : vector<24x32xf32> to vector<24x32xbf16>
      %cst_17 = arith.constant dense<0.000000e+00> : vector<20x24xf32>
      %24 = tpu.matmul %21, %23, %cst_17 {dimension_numbers = #tpu.dot_dimension_numbers<[1], [1], [0], [0], [0, 0, 1, 0], [], []>} : vector<20x32xbf16>, vector<24x32xbf16>, vector<20x24xf32> -> vector<20x24xf32>
      %25 = arith.truncf %24 : vector<20x24xf32> to vector<20x24xbf16>
      %c0_18 = arith.constant 0 : index
      %c0_19 = arith.constant 0 : index
      %26 = vector.load %arg13[%c0_18, %c0_19] : memref<20x24xbf16, #tpu.memory_space<vmem>>, vector<20x24xbf16>
      tpu.vector_store %arg13[%c0_18, %c0_19], %25 {strides = array<i32>} : memref<20x24xbf16, #tpu.memory_space<vmem>>, vector<20x24xbf16>,
      %27 = arith.mulf %24, %24 : vector<20x24xf32>
      %c0_20 = arith.constant 0 : index
      %c0_21 = arith.constant 0 : index
      %28 = vector.load %arg9[%c0_20, %c0_21] : memref<3x20xbf16, #tpu.memory_space<vmem>>, vector<3x20xbf16>
      %29 = arith.truncf %27 : vector<20x24xf32> to vector<20x24xbf16>
      %cst_22 = arith.constant dense<0.000000e+00> : vector<3x24xf32>
      %30 = tpu.matmul %28, %29, %cst_22 {dimension_numbers = #tpu.dot_dimension_numbers<[1], [0], [0], [1], [0, 0, 1, 1], [], []>} : vector<3x20xbf16>, vector<20x24xbf16>, vector<3x24xf32> -> vector<3x24xf32>
      %c0_23 = arith.constant 0 : index
      %c0_24 = arith.constant 0 : index
      %c0_25 = arith.constant 0 : index
      %31 = vector.load %arg10[%c0_23, %c0_24, %c0_25] : memref<1x3x24xf32, #tpu.memory_space<vmem>>, vector<1x3x24xf32>
      %32 = vector.shape_cast %31 : vector<1x3x24xf32> to vector<3x24xf32>
      %33 = vector.shape_cast %30 : vector<3x24xf32> to vector<1x3x24xf32>
      tpu.vector_store %arg10[%c0_23, %c0_24, %c0_25], %33 {strides = array<i32>} : memref<1x3x24xf32, #tpu.memory_space<vmem>>, vector<1x3x24xf32>,
    } else {
    }
    %c0_i32_1 = arith.constant 0 : i32
    %3 = arith.cmpi sgt, %arg0, %c0_i32_1 : i32
    %4 = arith.extui %3 : i1 to i32
    %c0_i32_2 = arith.constant 0 : i32
    %5 = arith.cmpi ne, %4, %c0_i32_2 : i32
    scf.if %5 {
      %c0 = arith.constant 0 : index
      %c0_3 = arith.constant 0 : index
      %6 = vector.load %arg5[%c0, %c0_3] : memref<24x24xbf16, #tpu.memory_space<vmem>>, vector<24x24xbf16>
      %c0_4 = arith.constant 0 : index
      %c0_5 = arith.constant 0 : index
      %7 = vector.load %arg12[%c0_4, %c0_5] : memref<24x32xf32, #tpu.memory_space<vmem>>, vector<24x32xf32>
      %8 = arith.truncf %7 : vector<24x32xf32> to vector<24x32xbf16>
      %cst = arith.constant dense<0.000000e+00> : vector<24x32xf32>
      %9 = tpu.matmul %6, %8, %cst {dimension_numbers = #tpu.dot_dimension_numbers<[1], [0], [0], [1], [0, 0, 1, 1], [], []>} : vector<24x24xbf16>, vector<24x32xbf16>, vector<24x32xf32> -> vector<24x32xf32>
      %c0_6 = arith.constant 0 : index
      %c0_7 = arith.constant 0 : index
      %10 = vector.load %arg12[%c0_6, %c0_7] : memref<24x32xf32, #tpu.memory_space<vmem>>, vector<24x32xf32>
      tpu.vector_store %arg12[%c0_6, %c0_7], %9 {strides = array<i32>} : memref<24x32xf32, #tpu.memory_space<vmem>>, vector<24x32xf32>,
      %11 = arith.truncf %9 : vector<24x32xf32> to vector<24x32xbf16>
      %c0_8 = arith.constant 0 : index
      %c0_9 = arith.constant 0 : index
      %12 = vector.load %arg6[%c0_8, %c0_9] : memref<20x20xbf16, #tpu.memory_space<vmem>>, vector<20x20xbf16>
      %c0_10 = arith.constant 0 : index
      %c0_11 = arith.constant 0 : index
      %13 = vector.load %arg11[%c0_10, %c0_11] : memref<20x32xbf16, #tpu.memory_space<vmem>>, vector<20x32xbf16>
      %cst_12 = arith.constant dense<0.000000e+00> : vector<20x32xf32>
      %14 = tpu.matmul %12, %13, %cst_12 {dimension_numbers = #tpu.dot_dimension_numbers<[1], [0], [0], [1], [0, 0, 1, 1], [], []>} : vector<20x20xbf16>, vector<20x32xbf16>, vector<20x32xf32> -> vector<20x32xf32>
      %c0_13 = arith.constant 0 : index
      %c0_14 = arith.constant 0 : index
      %c0_15 = arith.constant 0 : index
      %15 = vector.load %arg7[%c0_13, %c0_14, %c0_15] : memref<1x32x32xbf16, #tpu.memory_space<vmem>>, vector<1x32x32xbf16>
      %16 = vector.shape_cast %15 : vector<1x32x32xbf16> to vector<32x32xbf16>
      %cst_16 = arith.constant dense<0.000000e+00> : vector<32x24xf32>
      %17 = tpu.matmul %16, %11, %cst_16 {dimension_numbers = #tpu.dot_dimension_numbers<[1], [1], [0], [0], [0, 0, 1, 0], [], []>} : vector<32x32xbf16>, vector<24x32xbf16>, vector<32x24xf32> -> vector<32x24xf32>
      %c0_17 = arith.constant 0 : index
      %c0_18 = arith.constant 0 : index
      %c0_19 = arith.constant 0 : index
      %18 = vector.load %arg7[%c0_17, %c0_18, %c0_19] : memref<1x32x32xbf16, #tpu.memory_space<vmem>>, vector<1x32x32xbf16>
      %19 = vector.shape_cast %18 : vector<1x32x32xbf16> to vector<32x32xbf16>
      %20 = arith.truncf %17 : vector<32x24xf32> to vector<32x24xbf16>
      %21 = tpu.concatenate %19, %20 in 1 : vector<32x32xbf16>, vector<32x24xbf16> -> vector<32x56xbf16>
      %22 = arith.truncf %14 : vector<20x32xf32> to vector<20x32xbf16>
      %cst_20 = arith.constant dense<0.000000e+00> : vector<20x56xf32>
      %23 = tpu.matmul %22, %21, %cst_20 {dimension_numbers = #tpu.dot_dimension_numbers<[1], [0], [0], [1], [0, 0, 1, 1], [], []>} : vector<20x32xbf16>, vector<32x56xbf16>, vector<20x56xf32> -> vector<20x56xf32>
      %c0_21 = arith.constant 0 : index
      %c0_22 = arith.constant 0 : index
      %c0_23 = arith.constant 0 : index
      %24 = vector.load %arg8[%c0_21, %c0_22, %c0_23] : memref<1x1x32xf32, #tpu.memory_space<vmem>>, vector<1x1x32xf32>
      %25 = vector.shape_cast %24 : vector<1x1x32xf32> to vector<1x32xf32>
      %cst_24 = arith.constant dense<0.000000e+00> : vector<1x24xf32>
      %26 = tpu.matmul %25, %9, %cst_24 {dimension_numbers = #tpu.dot_dimension_numbers<[1], [1], [0], [0], [0, 0, 1, 0], [], []>} : vector<1x32xf32>, vector<24x32xf32>, vector<1x24xf32> -> vector<1x24xf32>
      %27 = vector.extract_strided_slice %23 {offsets = [0, 0], sizes = [20, 32], strides = [1, 1]} : vector<20x56xf32> to vector<20x32xf32>
      %c0_25 = arith.constant 0 : index
      %c0_26 = arith.constant 0 : index
      %c0_27 = arith.constant 0 : index
      %28 = vector.load %arg8[%c0_25, %c0_26, %c0_27] : memref<1x1x32xf32, #tpu.memory_space<vmem>>, vector<1x1x32xf32>
      %29 = vector.shape_cast %28 : vector<1x1x32xf32> to vector<1x32xf32>
      %30 = vector.broadcast %29 : vector<1x32xf32> to vector<20x32xf32>
      %31 = arith.addf %27, %30 : vector<20x32xf32>
      %32 = vector.extract_strided_slice %23 {offsets = [0, 32], sizes = [20, 24], strides = [1, 1]} : vector<20x56xf32> to vector<20x24xf32>
      %33 = vector.broadcast %26 : vector<1x24xf32> to vector<20x24xf32>
      %34 = arith.addf %32, %33 : vector<20x24xf32>
      %35 = arith.truncf %31 : vector<20x32xf32> to vector<20x32xbf16>
      %c0_28 = arith.constant 0 : index
      %c0_29 = arith.constant 0 : index
      %36 = vector.load %arg11[%c0_28, %c0_29] : memref<20x32xbf16, #tpu.memory_space<vmem>>, vector<20x32xbf16>
      tpu.vector_store %arg11[%c0_28, %c0_29], %35 {strides = array<i32>} : memref<20x32xbf16, #tpu.memory_space<vmem>>, vector<20x32xbf16>,
      %c0_30 = arith.constant 0 : index
      %c0_31 = arith.constant 0 : index
      %37 = vector.load %arg13[%c0_30, %c0_31] : memref<20x24xbf16, #tpu.memory_space<vmem>>, vector<20x24xbf16>
      %38 = arith.extf %37 : vector<20x24xbf16> to vector<20x24xf32>
      %39 = arith.mulf %38, %34 : vector<20x24xf32>
      %c0_32 = arith.constant 0 : index
      %c0_33 = arith.constant 0 : index
      %40 = vector.load %arg9[%c0_32, %c0_33] : memref<3x20xbf16, #tpu.memory_space<vmem>>, vector<3x20xbf16>
      %41 = arith.truncf %39 : vector<20x24xf32> to vector<20x24xbf16>
      %cst_34 = arith.constant dense<0.000000e+00> : vector<3x24xf32>
      %42 = tpu.matmul %40, %41, %cst_34 {dimension_numbers = #tpu.dot_dimension_numbers<[1], [0], [0], [1], [0, 0, 1, 1], [], []>} : vector<3x20xbf16>, vector<20x24xbf16>, vector<3x24xf32> -> vector<3x24xf32>
      %c0_35 = arith.constant 0 : index
      %c0_36 = arith.constant 0 : index
      %c0_37 = arith.constant 0 : index
      %43 = vector.load %arg10[%c0_35, %c0_36, %c0_37] : memref<1x3x24xf32, #tpu.memory_space<vmem>>, vector<1x3x24xf32>
      %44 = vector.shape_cast %43 : vector<1x3x24xf32> to vector<3x24xf32>
      %45 = vector.shape_cast %42 : vector<3x24xf32> to vector<1x3x24xf32>
      tpu.vector_store %arg10[%c0_35, %c0_36, %c0_37], %45 {strides = array<i32>} : memref<1x3x24xf32, #tpu.memory_space<vmem>>, vector<1x3x24xf32>,
    } else {
    }
    return
  }
  func.func @transform_0(%arg0: i32) -> (i32, i32) {
    %c0_i32 = arith.constant 0 : i32
    %c0_i32_0 = arith.constant 0 : i32
    %c0_i32_1 = arith.constant 0 : i32
    return %c0_i32, %c0_i32_0 : i32, i32
  }
  func.func @transform_1(%arg0: i32) -> (i32, i32) {
    %c0_i32 = arith.constant 0 : i32
    %c0_i32_0 = arith.constant 0 : i32
    %c0_i32_1 = arith.constant 0 : i32
    return %c0_i32, %c0_i32_0 : i32, i32
  }
  func.func @transform_2(%arg0: i32) -> (i32, i32) {
    %c0_i32 = arith.constant 0 : i32
    %c0_i32_0 = arith.constant 0 : i32
    %c0_i32_1 = arith.constant 0 : i32
    return %c0_i32, %c0_i32_0 : i32, i32
  }
  func.func @transform_3(%arg0: i32) -> (i32, i32) {
    %c0_i32 = arith.constant 0 : i32
    %c0_i32_0 = arith.constant 0 : i32
    %c0_i32_1 = arith.constant 0 : i32
    return %c0_i32, %c0_i32_0 : i32, i32
  }
  func.func @transform_4(%arg0: i32) -> (i32, i32) {
    %c0_i32 = arith.constant 0 : i32
    %c0_i32_0 = arith.constant 0 : i32
    %c0_i32_1 = arith.constant 0 : i32
    return %c0_i32, %c0_i32_0 : i32, i32
  }
  func.func @transform_5(%arg0: i32) -> (i32, i32) {
    %c0_i32 = arith.constant 0 : i32
    %c0_i32_0 = arith.constant 0 : i32
    %c0_i32_1 = arith.constant 0 : i32
    return %c0_i32, %c0_i32_0 : i32, i32
  }
  func.func @transform_6(%arg0: i32) -> (i32, i32, i32) {
    %c0_i32 = arith.constant 0 : i32
    %c0_i32_0 = arith.constant 0 : i32
    %c0_i32_1 = arith.constant 0 : i32
    return %arg0, %c0_i32, %c0_i32_0 : i32, i32, i32
  }
  func.func @transform_7(%arg0: i32) -> (i32, i32, i32) {
    %c0_i32 = arith.constant 0 : i32
    %c0_i32_0 = arith.constant 0 : i32
    %c0_i32_1 = arith.constant 0 : i32
    return %arg0, %c0_i32, %c0_i32_0 : i32, i32, i32
  }
  func.func @transform_8(%arg0: i32) -> (i32, i32) {
    %c0_i32 = arith.constant 0 : i32
    %c0_i32_0 = arith.constant 0 : i32
    %c0_i32_1 = arith.constant 0 : i32
    return %c0_i32, %c0_i32_0 : i32, i32
  }
  func.func @transform_9(%arg0: i32) -> (i32, i32, i32) {
    %c0_i32 = arith.constant 0 : i32
    %c0_i32_0 = arith.constant 0 : i32
    %c0_i32_1 = arith.constant 0 : i32
    return %arg0, %c0_i32, %c0_i32_0 : i32, i32, i32
  }
}

module attributes {stable_mosaic.version = 11 : i64} {
  func.func @_head_kernel(%arg0: i32, %arg1: memref<3x72xf32, #tpu.memory_space<vmem>>, %arg2: memref<72x16xf32, #tpu.memory_space<vmem>>, %arg3: memref<1x16xf32, #tpu.memory_space<vmem>>, %arg4: memref<16x3xf32, #tpu.memory_space<vmem>>, %arg5: memref<1x3xf32, #tpu.memory_space<vmem>>, %arg6: memref<3x3xf32, #tpu.memory_space<vmem>>) attributes {dimension_semantics = [#tpu.dimension_semantics<arbitrary>], iteration_bounds = array<i64: 1>, scalar_prefetch = 0 : i64, scratch_operands = 0 : i64, tpu.core_type = #tpu.core_type<tc>, window_params = [{pipeline_mode = #tpu.pipeline_mode<synchronous>, transform_indices = @transform_0, window_bounds = array<i64: 3, 72>}, {pipeline_mode = #tpu.pipeline_mode<synchronous>, transform_indices = @transform_1, window_bounds = array<i64: 72, 16>}, {pipeline_mode = #tpu.pipeline_mode<synchronous>, transform_indices = @transform_2, window_bounds = array<i64: 1, 16>}, {pipeline_mode = #tpu.pipeline_mode<synchronous>, transform_indices = @transform_3, window_bounds = array<i64: 16, 3>}, {pipeline_mode = #tpu.pipeline_mode<synchronous>, transform_indices = @transform_4, window_bounds = array<i64: 1, 3>}, {pipeline_mode = #tpu.pipeline_mode<synchronous>, transform_indices = @transform_5, window_bounds = array<i64: 3, 3>}]} {
    %c0 = arith.constant 0 : index
    %c0_0 = arith.constant 0 : index
    %0 = vector.load %arg1[%c0, %c0_0] : memref<3x72xf32, #tpu.memory_space<vmem>>, vector<3x72xf32>
    %cst = arith.constant dense<0.000000e+00> : vector<72xf32>
    %1 = vector.multi_reduction <add>, %0, %cst [0] : vector<3x72xf32> to vector<72xf32>
    %2 = vector.shape_cast %1 : vector<72xf32> to vector<1x72xf32>
    %cst_1 = arith.constant 3.000000e+00 : f32
    %3 = vector.broadcast %cst_1 : f32 to vector<1x72xf32>
    %4 = arith.divf %2, %3 : vector<1x72xf32>
    %5 = vector.broadcast %4 : vector<1x72xf32> to vector<3x72xf32>
    %6 = arith.subf %0, %5 : vector<3x72xf32>
    %7 = arith.mulf %6, %6 : vector<3x72xf32>
    %cst_2 = arith.constant dense<0.000000e+00> : vector<72xf32>
    %8 = vector.multi_reduction <add>, %7, %cst_2 [0] : vector<3x72xf32> to vector<72xf32>
    %9 = vector.shape_cast %8 : vector<72xf32> to vector<1x72xf32>
    %cst_3 = arith.constant 3.000000e+00 : f32
    %10 = vector.broadcast %cst_3 : f32 to vector<1x72xf32>
    %11 = arith.divf %9, %10 : vector<1x72xf32>
    %12 = vector.broadcast %4 : vector<1x72xf32> to vector<3x72xf32>
    %13 = arith.subf %0, %12 : vector<3x72xf32>
    %cst_4 = arith.constant 9.99999974E-6 : f32
    %14 = vector.broadcast %cst_4 : f32 to vector<1x72xf32>
    %15 = arith.addf %11, %14 : vector<1x72xf32>
    %16 = math.rsqrt %15 : vector<1x72xf32>
    %17 = vector.broadcast %16 : vector<1x72xf32> to vector<3x72xf32>
    %18 = arith.mulf %13, %17 : vector<3x72xf32>
    %c0_5 = arith.constant 0 : index
    %c0_6 = arith.constant 0 : index
    %19 = vector.load %arg2[%c0_5, %c0_6] : memref<72x16xf32, #tpu.memory_space<vmem>>, vector<72x16xf32>
    %cst_7 = arith.constant dense<0.000000e+00> : vector<3x16xf32>
    %20 = tpu.matmul %18, %19, %cst_7 {dimension_numbers = #tpu.dot_dimension_numbers<[1], [0], [0], [1], [0, 0, 1, 1], [], []>} : vector<3x72xf32>, vector<72x16xf32>, vector<3x16xf32> -> vector<3x16xf32>
    %c0_8 = arith.constant 0 : index
    %c0_9 = arith.constant 0 : index
    %21 = vector.load %arg3[%c0_8, %c0_9] : memref<1x16xf32, #tpu.memory_space<vmem>>, vector<1x16xf32>
    %22 = vector.broadcast %21 : vector<1x16xf32> to vector<3x16xf32>
    %23 = arith.addf %20, %22 : vector<3x16xf32>
    %cst_10 = arith.constant 0.000000e+00 : f32
    %24 = vector.broadcast %cst_10 : f32 to vector<3x16xf32>
    %25 = arith.maximumf %23, %24 : vector<3x16xf32>
    %c0_11 = arith.constant 0 : index
    %c0_12 = arith.constant 0 : index
    %26 = vector.load %arg4[%c0_11, %c0_12] : memref<16x3xf32, #tpu.memory_space<vmem>>, vector<16x3xf32>
    %cst_13 = arith.constant dense<0.000000e+00> : vector<3x3xf32>
    %27 = tpu.matmul %25, %26, %cst_13 {dimension_numbers = #tpu.dot_dimension_numbers<[1], [0], [0], [1], [0, 0, 1, 1], [], []>} : vector<3x16xf32>, vector<16x3xf32>, vector<3x3xf32> -> vector<3x3xf32>
    %c0_14 = arith.constant 0 : index
    %c0_15 = arith.constant 0 : index
    %28 = vector.load %arg5[%c0_14, %c0_15] : memref<1x3xf32, #tpu.memory_space<vmem>>, vector<1x3xf32>
    %29 = vector.broadcast %28 : vector<1x3xf32> to vector<3x3xf32>
    %30 = arith.addf %27, %29 : vector<3x3xf32>
    %cst_16 = arith.constant dense<0xFF800000> : vector<3xf32>
    %31 = vector.multi_reduction <maximumf>, %30, %cst_16 [1] : vector<3x3xf32> to vector<3xf32>
    %32 = vector.shape_cast %31 : vector<3xf32> to vector<3x1xf32>
    %33 = vector.broadcast %32 : vector<3x1xf32> to vector<3x3xf32>
    %34 = arith.subf %30, %33 : vector<3x3xf32>
    %35 = math.exp %34 : vector<3x3xf32>
    %cst_17 = arith.constant dense<0.000000e+00> : vector<3xf32>
    %36 = vector.multi_reduction <add>, %35, %cst_17 [1] : vector<3x3xf32> to vector<3xf32>
    %37 = vector.shape_cast %36 : vector<3xf32> to vector<3x1xf32>
    %38 = math.log %37 : vector<3x1xf32>
    %39 = arith.addf %38, %32 : vector<3x1xf32>
    %40 = vector.broadcast %39 : vector<3x1xf32> to vector<3x3xf32>
    %41 = arith.subf %30, %40 : vector<3x3xf32>
    %c0_18 = arith.constant 0 : index
    %c0_19 = arith.constant 0 : index
    %42 = vector.load %arg6[%c0_18, %c0_19] : memref<3x3xf32, #tpu.memory_space<vmem>>, vector<3x3xf32>
    tpu.vector_store %arg6[%c0_18, %c0_19], %41 {strides = array<i32>} : memref<3x3xf32, #tpu.memory_space<vmem>>, vector<3x3xf32>,
    return
  }
  func.func @transform_0(%arg0: i32) -> (i32, i32) {
    %c0_i32 = arith.constant 0 : i32
    %c0_i32_0 = arith.constant 0 : i32
    %c0_i32_1 = arith.constant 0 : i32
    return %c0_i32, %c0_i32_0 : i32, i32
  }
  func.func @transform_1(%arg0: i32) -> (i32, i32) {
    %c0_i32 = arith.constant 0 : i32
    %c0_i32_0 = arith.constant 0 : i32
    %c0_i32_1 = arith.constant 0 : i32
    return %c0_i32, %c0_i32_0 : i32, i32
  }
  func.func @transform_2(%arg0: i32) -> (i32, i32) {
    %c0_i32 = arith.constant 0 : i32
    %c0_i32_0 = arith.constant 0 : i32
    %c0_i32_1 = arith.constant 0 : i32
    return %c0_i32, %c0_i32_0 : i32, i32
  }
  func.func @transform_3(%arg0: i32) -> (i32, i32) {
    %c0_i32 = arith.constant 0 : i32
    %c0_i32_0 = arith.constant 0 : i32
    %c0_i32_1 = arith.constant 0 : i32
    return %c0_i32, %c0_i32_0 : i32, i32
  }
  func.func @transform_4(%arg0: i32) -> (i32, i32) {
    %c0_i32 = arith.constant 0 : i32
    %c0_i32_0 = arith.constant 0 : i32
    %c0_i32_1 = arith.constant 0 : i32
    return %c0_i32, %c0_i32_0 : i32, i32
  }
  func.func @transform_5(%arg0: i32) -> (i32, i32) {
    %c0_i32 = arith.constant 0 : i32
    %c0_i32_0 = arith.constant 0 : i32
    %c0_i32_1 = arith.constant 0 : i32
    return %c0_i32, %c0_i32_0 : i32, i32
  }
}

</mosaic_0001>

<llo_original>
// kernel: rw_gnn_forward.3
$region0: #{rw_gnn_forward.3}
  #allocation0 [shape = 'u32[]', space=smem, size = 0x4, offset = 0x4, fixed_abs, tag = 'smem constant byte address 0x4 - core index']
  #allocation1 [shape = 'u32[144,128]{1,0:T(1,128)}', space=vmem, size = 0x12000, scoped, tag = 'internal scratch']
  %s0 = inlined_call_operand.vmem [shape: f32[3,72], index: 0, kind: input, shape index: {}]
  %s1 = inlined_call_operand.vmem [shape: f32[72,16], index: 1, kind: input, shape index: {}]
  %s2 = inlined_call_operand.vmem [shape: f32[1,16], index: 2, kind: input, shape index: {}]
  %s3 = inlined_call_operand.vmem [shape: f32[16,3], index: 3, kind: input, shape index: {}]
  %s4 = inlined_call_operand.vmem [shape: f32[1,3], index: 4, kind: input, shape index: {}]
  %s5 = inlined_call_operand.hbm [shape: f32[3,3], index: 5, kind: output, shape index: {}]
  %s6 = sld [smem:[#allocation0]]
  $region30: #{rw_gnn_forward.3} parent=0
    _
  %s8 = ssub.s32 1, %s6
  %s9 = scalar_select 0, %s8, %s6
  $region1: #{rw_gnn_forward.3} parent=0
    #allocation2 [shape = 'u8[2048]{0}', space=vmem, size = 0x800, scoped, tag = 'output window, operand 0, single buffered']
    #allocation3 [shape = 's32[1]{0}', space=sflag, size = 0x4, scoped, tag = 'scoped memory for rw_gnn_forward.3']
    %10 = vsyncpa [#allocation3], 0
    // Predicated region
    $region2: #{rw_gnn_forward.3} parent=1 // pred_check
      _
    $region3: #{rw_gnn_forward.3} parent=1 // pred_check_branch
      %12 = sbr.rel (0) target = $region5
    $region4: #{rw_gnn_forward.3} parent=1 // pred_region
      _
    $region5: #{rw_gnn_forward.3} parent=1 // pred_fallthru
      _
    // Predicated region
    $region6: #{rw_gnn_forward.3} parent=1 // pred_check
      _
    $region7: #{rw_gnn_forward.3} parent=1 // pred_check_branch
      %14 = sbr.rel (0) target = $region9
    $region8: #{rw_gnn_forward.3} parent=1 // pred_region
      _
    $region9: #{rw_gnn_forward.3} parent=1 // pred_fallthru
      _
    // Predicated region
    $region10: #{rw_gnn_forward.3} parent=1 // pred_check
      _
    $region11: #{rw_gnn_forward.3} parent=1 // pred_check_branch
      %16 = sbr.rel (0) target = $region13
    $region12: #{rw_gnn_forward.3} parent=1 // pred_region
      _
    $region13: #{rw_gnn_forward.3} parent=1 // pred_fallthru
      _
    // Predicated region
    $region14: #{rw_gnn_forward.3} parent=1 // pred_check
      _
    $region15: #{rw_gnn_forward.3} parent=1 // pred_check_branch
      %18 = sbr.rel (0) target = $region17
    $region16: #{rw_gnn_forward.3} parent=1 // pred_region
      _
    $region17: #{rw_gnn_forward.3} parent=1 // pred_fallthru
      _
    // Predicated region
    $region18: #{rw_gnn_forward.3} parent=1 // pred_check
      _
    $region19: #{rw_gnn_forward.3} parent=1 // pred_check_branch
      %20 = sbr.rel (0) target = $region21
    $region20: #{rw_gnn_forward.3} parent=1 // pred_region
      _
    $region21: #{rw_gnn_forward.3} parent=1 // pred_fallthru
      _
    %v21 = vld [vmem:[%s0] sm:$0x7]
    %vm22 = vcmask 583680
    %v23 = vsel %vm22, %v21, 0.0
    %v24 = vrot.slane %v23, 4
    %v25 = vadd.f32 %v23, %v24
    %v26 = vrot.slane %v25, 2
    %v27 = vadd.f32 %v25, %v26
    %v28 = vrot.slane %v27, 1
    %v29 = vadd.f32 %v27, %v28
    %v30 = vrcp.pop 3.0
    %v31 = vmul.f32 %v29, %v30
    %v32 = vsub.f32 %v21, %v31
    %v33 = vmul.f32 %v32, %v32
    %v34 = vsel %vm22, %v33, 0.0
    %v35 = vrot.slane %v34, 4
    %v36 = vadd.f32 %v34, %v35
    %v37 = vrot.slane %v36, 2
    %v38 = vadd.f32 %v36, %v37
    %v39 = vrot.slane %v38, 1
    %v40 = vadd.f32 %v38, %v39
    %v41 = vmul.f32 %v40, %v30
    %v42 = vadd.f32 %v41, 1e-05
    %v43 = vrsqrt.pop %v42
    %v44 = vmul.f32 %v32, %v43
    %v45 = vld [vmem:[%s1] sm:$0xff]
    %v46 = vld [vmem:[%s1 + $0x8] sm:$0xff]
    %v47 = vld [vmem:[%s1 + $0x10] sm:$0xff]
    %v48 = vld [vmem:[%s1 + $0x18] sm:$0xff]
    %v49 = vld [vmem:[%s1 + $0x20] sm:$0xff]
    %v50 = vld [vmem:[%s1 + $0x28] sm:$0xff]
    %v51 = vld [vmem:[%s1 + $0x30] sm:$0xff]
    %v52 = vld [vmem:[%s1 + $0x38] sm:$0xff]
    %v53 = vld [vmem:[%s1 + $0x40] sm:$0xff]
    %v54 = vld [vmem:[%s2] sm:$0x1]
    %v56 = vlaneseq
    %v57 = vshrl.u32 %v56, 7
    %v58 = vsub.s32 0, %v57
    %v59 = vrot.slane %v54, %v58
    %vm61 = vcmask 588800
    %v63 = vsel %vm61, %v44, 0
    %65 = vmatprep.subr.mxu0 0.0
    %66 = vmatpush1.msra.mxu0 %v45
    %67 = vmatprep.subr.mxu0 0.0
    %68 = vmatpush1.msra.mxu0 %v46
    %69 = vmatprep.subr.mxu0 0.0
    %70 = vmatpush1.msra.mxu0 %v47
    %71 = vmatprep.subr.mxu0 0.0
    %72 = vmatpush1.msra.mxu0 %v48
    %73 = vmatprep.subr.mxu0 0.0
    %74 = vmatpush1.msra.mxu0 %v49
    %75 = vmatprep.subr.mxu0 0.0
    %76 = vmatpush1.msra.mxu0 %v50
    %77 = vmatprep.subr.mxu0 0.0
    %78 = vmatpush1.msra.mxu0 %v51
    %79 = vmatprep.subr.mxu0 0.0
    %80 = vmatpush1.msra.mxu0 %v52
    %81 = vmatprep.subr.mxu0 0.0
    %82 = vmatpush1.msra.mxu0 %v53
    %83 = vmatprep.subr.mxu0 0.0
    %84 = vmatpush1.msra.mxu0 0.0
    %85 = vmatprep.subr.mxu0 0.0
    %86 = vmatpush1.msra.mxu0 0.0
    %87 = vmatprep.subr.mxu0 0.0
    %88 = vmatpush1.msra.mxu0 0.0
    %89 = vmatprep.subr.mxu0 0.0
    %90 = vmatpush1.msra.mxu0 0.0
    %91 = vmatprep.subr.mxu0 0.0
    %92 = vmatpush1.msra.mxu0 0.0
    %93 = vmatprep.subr.mxu0 0.0
    %94 = vmatpush1.msra.mxu0 0.0
    %95 = vmatprep.subr.mxu0 0.0
    %96 = vmatpush1.msra.mxu0 0.0
    %97 = vmatprep.subr.mxu0 0.0
    %98 = vmatpush1.msra.mxu0 0.0
    %99 = vmatprep.subr.mxu0 0.0
    %100 = vmatpush1.msra.mxu0 0.0
    %101 = vmatprep.subr.mxu0 0.0
    %102 = vmatpush1.msra.mxu0 0.0
    %103 = vmatprep.subr.mxu0 0.0
    %104 = vmatpush1.msra.mxu0 0.0
    %105 = vmatprep.subr.mxu0 0.0
    %106 = vmatpush1.msra.mxu0 0.0
    %107 = vmatprep.subr.mxu0 0.0
    %108 = vmatpush1.msra.mxu0 0.0
    %109 = vmatprep.subr.mxu0 0.0
    %110 = vmatpush1.msra.mxu0 0.0
    %111 = vmatprep.subr.mxu0 0.0
    %112 = vmatpush1.msra.mxu0 0.0
    %113 = vmatprep.subr.mxu0 0.0
    %114 = vmatpush1.msra.mxu0 0.0
    %115 = vmatprep.subr.mxu0 0.0
    %116 = vmatpush1.msra.mxu0 0.0
    %117 = vmatprep.subr.mxu0 0.0
    %118 = vmatpush1.msra.mxu0 0.0
    %119 = vmatprep.subr.mxu0 0.0
    %120 = vmatpush1.msra.mxu0 0.0
    %121 = vmatprep.subr.mxu0 0.0
    %122 = vmatpush1.msra.mxu0 0.0
    %123 = vmatprep.subr.mxu0 0.0
    %124 = vmatpush1.msra.mxu0 0.0
    %125 = vmatprep.subr.mxu0 0.0
    %126 = vmatpush1.msra.mxu0 0.0
    %127 = vmatprep.subr.mxu0 0.0
    %128 = vmatpush1.msra.mxu0 0.0
    %129 = vmatprep.mubr.f32.mxu0 0.0
    %130 = vmatmul.mubr.f32.gmra.mrb[0].mxu0 %v63
    %v131 = vpop.f32.mrb[0].mxu0
    %v132 = vadd.f32 %v59, %v131
    %v133 = vpop.f32.mrb[0].mxu0
    %134 = vdwg.mxu0
    %v135 = vmax.f32 %v132, 0.0
    %v136 = vld [vmem:[%s3] sm:$0xff]
    %v137 = vld [vmem:[%s3 + $0x8] sm:$0xff]
    %v138 = vld [vmem:[%s4] sm:$0x1]
    %v140 = vlaneseq
    %v141 = vshrl.u32 %v140, 7
    %v142 = vsub.s32 0, %v141
    %v143 = vrot.slane %v138, %v142
    %vm145 = vcmask 130048
    %v147 = vsel %vm145, %v135, 0
    %149 = vmatprep.subr.mxu0 0.0
    %150 = vmatpush1.msra.mxu0 %v136
    %151 = vmatprep.subr.mxu0 0.0
    %152 = vmatpush1.msra.mxu0 %v137
    %153 = vmatprep.subr.mxu0 0.0
    %154 = vmatpush1.msra.mxu0 0.0
    %155 = vmatprep.subr.mxu0 0.0
    %156 = vmatpush1.msra.mxu0 0.0
    %157 = vmatprep.subr.mxu0 0.0
    %158 = vmatpush1.msra.mxu0 0.0
    %159 = vmatprep.subr.mxu0 0.0
    %160 = vmatpush1.msra.mxu0 0.0
    %161 = vmatprep.subr.mxu0 0.0
    %162 = vmatpush1.msra.mxu0 0.0
    %163 = vmatprep.subr.mxu0 0.0
    %164 = vmatpush1.msra.mxu0 0.0
    %165 = vmatprep.subr.mxu0 0.0
    %166 = vmatpush1.msra.mxu0 0.0
    %167 = vmatprep.subr.mxu0 0.0
    %168 = vmatpush1.msra.mxu0 0.0
    %169 = vmatprep.subr.mxu0 0.0
    %170 = vmatpush1.msra.mxu0 0.0
    %171 = vmatprep.subr.mxu0 0.0
    %172 = vmatpush1.msra.mxu0 0.0
    %173 = vmatprep.subr.mxu0 0.0
    %174 = vmatpush1.msra.mxu0 0.0
    %175 = vmatprep.subr.mxu0 0.0
    %176 = vmatpush1.msra.mxu0 0.0
    %177 = vmatprep.subr.mxu0 0.0
    %178 = vmatpush1.msra.mxu0 0.0
    %179 = vmatprep.subr.mxu0 0.0
    %180 = vmatpush1.msra.mxu0 0.0
    %181 = vmatprep.subr.mxu0 0.0
    %182 = vmatpush1.msra.mxu0 0.0
    %183 = vmatprep.subr.mxu0 0.0
    %184 = vmatpush1.msra.mxu0 0.0
    %185 = vmatprep.subr.mxu0 0.0
    %186 = vmatpush1.msra.mxu0 0.0
    %187 = vmatprep.subr.mxu0 0.0
    %188 = vmatpush1.msra.mxu0 0.0
    %189 = vmatprep.subr.mxu0 0.0
    %190 = vmatpush1.msra.mxu0 0.0
    %191 = vmatprep.subr.mxu0 0.0
    %192 = vmatpush1.msra.mxu0 0.0
    %193 = vmatprep.subr.mxu0 0.0
    %194 = vmatpush1.msra.mxu0 0.0
    %195 = vmatprep.subr.mxu0 0.0
    %196 = vmatpush1.msra.mxu0 0.0
    %197 = vmatprep.subr.mxu0 0.0
    %198 = vmatpush1.msra.mxu0 0.0
    %199 = vmatprep.subr.mxu0 0.0
    %200 = vmatpush1.msra.mxu0 0.0
    %201 = vmatprep.subr.mxu0 0.0
    %202 = vmatpush1.msra.mxu0 0.0
    %203 = vmatprep.subr.mxu0 0.0
    %204 = vmatpush1.msra.mxu0 0.0
    %205 = vmatprep.subr.mxu0 0.0
    %206 = vmatpush1.msra.mxu0 0.0
    %207 = vmatprep.subr.mxu0 0.0
    %208 = vmatpush1.msra.mxu0 0.0
    %209 = vmatprep.subr.mxu0 0.0
    %210 = vmatpush1.msra.mxu0 0.0
    %211 = vmatprep.subr.mxu0 0.0
    %212 = vmatpush1.msra.mxu0 0.0
    %213 = vmatprep.mubr.f32.mxu0 0.0
    %214 = vmatmul.mubr.f32.gmra.mrb[0].mxu0 %v147
    %v215 = vpop.f32.mrb[0].mxu0
    %v216 = vadd.f32 %v143, %v215
    %v217 = vpop.f32.mrb[0].mxu0
    %218 = vdwg.mxu0
    %vm219 = vcmask 18432
    %v220 = vsel %vm219, %v216, -inf
    %221 = vmax.xlane.f32.xlu0 %v220
    %v222 = vpop.xlane.xlu0 %221
    %v223 = vsub.f32 %v216, %v222
    %v224 = vmul.f32 %v223, 1.442695
    %v225 = vpow.pop %v224
    %v226 = vsel %vm219, %v225, 0.0
    %227 = vadd.xlane.f32.xlu0 %v226
    %v228 = vpop.xlane.xlu0 %227
    %v229 = vlog2.pop %v228
    %v230 = vmul.f32 %v229, 0.6931472
    %v231 = vadd.f32 %v230, %v222
    %v232 = vsub.f32 %v216, %v231
    %233 = vst.msk [vmem:[#allocation2] sm:$0x7] %vm219, %v232
    // Predicated region
    $region22: #{rw_gnn_forward.3} parent=1 // pred_check
      _
    $region23: #{rw_gnn_forward.3} parent=1 // pred_check_branch
      %235 = sbr.rel (0) target = $region25
    $region24: #{rw_gnn_forward.3} parent=1 // pred_region
      %s237 = ssub.s32 64, 64
      %238 = vsyncadd [#allocation3], %s237
      %s240 = sshll.u32 [#allocation2], 4
      %s241 = int_to_ptr.vmem [resolvable:$true] %s240
      %243 = dma.vmem_to_hbm [thread:$0]  %s241, 64, %s5, [#allocation3]
    $region25: #{rw_gnn_forward.3} parent=1 // pred_fallthru
      _
    // Predicated region
    $region26: #{rw_gnn_forward.3} parent=1 // pred_check
      _
    $region27: #{rw_gnn_forward.3} parent=1 // pred_check_branch
      %245 = sbr.rel (0) target = $region29
    $region28: #{rw_gnn_forward.3} parent=1 // pred_region
      %246 = dma.done [#allocation3], 64
    $region29: #{rw_gnn_forward.3} parent=1 // pred_fallthru
      _
    %247 = vsyncpa [#allocation3], 1

// kernel: rw_gnn_forward.2
$region0: #{rw_gnn_forward.2}
  #allocation0 [shape = 'u32[]', space=smem, size = 0x4, offset = 0x4, fixed_abs, tag = 'smem constant byte address 0x4 - core index']
  #allocation1 [shape = 'u32[144,128]{1,0:T(1,128)}', space=vmem, size = 0x12000, scoped, tag = 'internal scratch']
  #allocation2 [shape = 'bf16[20,32]{1,0:T(8,128)(2,1)}', space=vmem, size = 0x1800, scoped, tag = 'scratch operand']
  #allocation3 [shape = 'f32[24,32]{1,0:T(8,128)}', space=vmem, size = 0x3000, scoped, tag = 'scratch operand']
  #allocation4 [shape = 'bf16[20,24]{1,0:T(8,128)(2,1)}', space=vmem, size = 0x1800, scoped, tag = 'scratch operand']
  %s0 = inlined_call_operand.vmem [shape: bf16[20,8], index: 0, kind: input, shape index: {}]
  %s1 = inlined_call_operand.vmem [shape: bf16[8,32], index: 1, kind: input, shape index: {}]
  %s2 = inlined_call_operand.vmem [shape: f32[1,32], index: 2, kind: input, shape index: {}]
  %s3 = inlined_call_operand.vmem [shape: f32[24,32], index: 3, kind: input, shape index: {}]
  %s4 = inlined_call_operand.vmem [shape: bf16[24,24], index: 4, kind: input, shape index: {}]
  %s5 = inlined_call_operand.vmem [shape: bf16[20,20], index: 5, kind: input, shape index: {}]
  %s6 = inlined_call_operand.vmem [shape: bf16[3,32,32], index: 6, kind: input, shape index: {}]
  %s7 = inlined_call_operand.vmem [shape: f32[3,1,32], index: 7, kind: input, shape index: {}]
  %s8 = inlined_call_operand.vmem [shape: bf16[3,20], index: 8, kind: input, shape index: {}]
  %s9 = inlined_call_operand.vmem [shape: f32[3,3,24], index: 9, kind: output, shape index: {}]
  %s10 = sld [smem:[#allocation0]]
  $region77: #{rw_gnn_forward.2} parent=0
    _
  %s12 = ssub.s32 1, %s10
  %s13 = scalar_select 0, %s12, %s10
  loop: start=0, step=1, limit=5
  $region2: #{rw_gnn_forward.2} parent=0 // loop_pre_header
    _
  $region3: #{rw_gnn_forward.2} parent=0 // loop_header
    %s15 = sphi 0, %s19
    %p16 = scmp.ge.s32.totalorder %s15, 5
    %s23 = sphi 0, %s23
    %s25 = sphi 0, %s23
    %s26 = sphi 0, %s25
    %s40 = sphi 0, %s26
    %s44 = sphi 0, %s44
    %s46 = sphi 0, %s44
    %s47 = sphi 0, %s46
    %s61 = sphi 0, %s47
    %s65 = sphi 0, %s65
    %s67 = sphi 0, %s65
    %s68 = sphi 0, %s67
    %s82 = sphi 0, %s68
    %s86 = sphi 0, %s86
    %s88 = sphi 0, %s86
    %s89 = sphi 0, %s88
    %s103 = sphi 0, %s89
    %s107 = sphi 0, %s107
    %s109 = sphi 0, %s107
    %s110 = sphi 0, %s109
    %s124 = sphi 0, %s110
    %s128 = sphi 0, %s128
    %s130 = sphi 0, %s128
    %s131 = sphi 0, %s130
    %s145 = sphi 0, %s131
    %s151 = sphi 0, %s153
    %s154 = sphi 0, %s151
    %s155 = sphi 0, %s154
    %s171 = sphi 0, %s155
    %s177 = sphi 0, %s179
    %s180 = sphi 0, %s177
    %s181 = sphi 0, %s180
    %s197 = sphi 0, %s181
    %s201 = sphi 0, %s201
    %s203 = sphi 0, %s201
    %s204 = sphi 0, %s203
    %s218 = sphi 0, %s204
    %s224 = sphi 0, %s226
    %s227 = sphi 0, %s224
    %s228 = sphi 0, %s227
    %s244 = sphi 0, %s228
  $region4: #{rw_gnn_forward.2} parent=0 // loop_header_branch
    %18 = sbr.rel (%p16) target = $region8
  $region5: #{rw_gnn_forward.2} parent=0 // loop_body
    %s20 = ssub.s32 %s15, 1
    %s21 = ssub.s32 %s15, 2
    %s22 = sadd.s32 %s15, 1
    %s24 = sadd.s32 %s23, 1
    %p27 = scmp.eq.s32.totalorder %s15, 2
    %p28 = scmp.ne.s32.totalorder %s23, %s25
    %p29 = scmp.eq.s32.totalorder %s15, 0
    %p30 = por %p28, %p29
    %p31 = scmp.ne.s32.totalorder %s23, %s25
    %p32 = scmp.eq.s32.totalorder %s20, 2
    %p33 = por %p31, %p32
    %p34 = scmp.ne.s32.totalorder %s25, %s26
    %p35 = scmp.eq.s32.totalorder %s20, 0
    %p36 = por %p34, %p35
    %p37 = scmp.ne.s32.totalorder %s25, %s26
    %p38 = scmp.eq.s32.totalorder %s21, 2
    %p39 = por %p37, %p38
    %p41 = scmp.ne.s32.totalorder %s26, %s40
    %p42 = scmp.eq.s32.totalorder %s21, 0
    %p43 = por %p41, %p42
    %s45 = sadd.s32 %s44, 1
    %p48 = scmp.eq.s32.totalorder %s15, 2
    %p49 = scmp.ne.s32.totalorder %s44, %s46
    %p50 = scmp.eq.s32.totalorder %s15, 0
    %p51 = por %p49, %p50
    %p52 = scmp.ne.s32.totalorder %s44, %s46
    %p53 = scmp.eq.s32.totalorder %s20, 2
    %p54 = por %p52, %p53
    %p55 = scmp.ne.s32.totalorder %s46, %s47
    %p56 = scmp.eq.s32.totalorder %s20, 0
    %p57 = por %p55, %p56
    %p58 = scmp.ne.s32.totalorder %s46, %s47
    %p59 = scmp.eq.s32.totalorder %s21, 2
    %p60 = por %p58, %p59
    %p62 = scmp.ne.s32.totalorder %s47, %s61
    %p63 = scmp.eq.s32.totalorder %s21, 0
    %p64 = por %p62, %p63
    %s66 = sadd.s32 %s65, 1
    %p69 = scmp.eq.s32.totalorder %s15, 2
    %p70 = scmp.ne.s32.totalorder %s65, %s67
    %p71 = scmp.eq.s32.totalorder %s15, 0
    %p72 = por %p70, %p71
    %p73 = scmp.ne.s32.totalorder %s65, %s67
    %p74 = scmp.eq.s32.totalorder %s20, 2
    %p75 = por %p73, %p74
    %p76 = scmp.ne.s32.totalorder %s67, %s68
    %p77 = scmp.eq.s32.totalorder %s20, 0
    %p78 = por %p76, %p77
    %p79 = scmp.ne.s32.totalorder %s67, %s68
    %p80 = scmp.eq.s32.totalorder %s21, 2
    %p81 = por %p79, %p80
    %p83 = scmp.ne.s32.totalorder %s68, %s82
    %p84 = scmp.eq.s32.totalorder %s21, 0
    %p85 = por %p83, %p84
    %s87 = sadd.s32 %s86, 1
    %p90 = scmp.eq.s32.totalorder %s15, 2
    %p91 = scmp.ne.s32.totalorder %s86, %s88
    %p92 = scmp.eq.s32.totalorder %s15, 0
    %p93 = por %p91, %p92
    %p94 = scmp.ne.s32.totalorder %s86, %s88
    %p95 = scmp.eq.s32.totalorder %s20, 2
    %p96 = por %p94, %p95
    %p97 = scmp.ne.s32.totalorder %s88, %s89
    %p98 = scmp.eq.s32.totalorder %s20, 0
    %p99 = por %p97, %p98
    %p100 = scmp.ne.s32.totalorder %s88, %s89
    %p101 = scmp.eq.s32.totalorder %s21, 2
    %p102 = por %p100, %p101
    %p104 = scmp.ne.s32.totalorder %s89, %s103
    %p105 = scmp.eq.s32.totalorder %s21, 0
    %p106 = por %p104, %p105
    %s108 = sadd.s32 %s107, 1
    %p111 = scmp.eq.s32.totalorder %s15, 2
    %p112 = scmp.ne.s32.totalorder %s107, %s109
    %p113 = scmp.eq.s32.totalorder %s15, 0
    %p114 = por %p112, %p113
    %p115 = scmp.ne.s32.totalorder %s107, %s109
    %p116 = scmp.eq.s32.totalorder %s20, 2
    %p117 = por %p115, %p116
    %p118 = scmp.ne.s32.totalorder %s109, %s110
    %p119 = scmp.eq.s32.totalorder %s20, 0
    %p120 = por %p118, %p119
    %p121 = scmp.ne.s32.totalorder %s109, %s110
    %p122 = scmp.eq.s32.totalorder %s21, 2
    %p123 = por %p121, %p122
    %p125 = scmp.ne.s32.totalorder %s110, %s124
    %p126 = scmp.eq.s32.totalorder %s21, 0
    %p127 = por %p125, %p126
    %s129 = sadd.s32 %s128, 1
    %p132 = scmp.eq.s32.totalorder %s15, 2
    %p133 = scmp.ne.s32.totalorder %s128, %s130
    %p134 = scmp.eq.s32.totalorder %s15, 0
    %p135 = por %p133, %p134
    %p136 = scmp.ne.s32.totalorder %s128, %s130
    %p137 = scmp.eq.s32.totalorder %s20, 2
    %p138 = por %p136, %p137
    %p139 = scmp.ne.s32.totalorder %s130, %s131
    %p140 = scmp.eq.s32.totalorder %s20, 0
    %p141 = por %p139, %p140
    %p142 = scmp.ne.s32.totalorder %s130, %s131
    %p143 = scmp.eq.s32.totalorder %s21, 2
    %p144 = por %p142, %p143
    %p146 = scmp.ne.s32.totalorder %s131, %s145
    %p147 = scmp.eq.s32.totalorder %s21, 0
    %p148 = por %p146, %p147
    %s149 = ssub.s32 %s15, %s22
    %p150 = scmp.eq.s32.totalorder %s149, 0
    %s152 = sadd.s32 %s151, 1
    %s153 = scalar_select %p150, %s151, %s152
    %p156 = pneg %p150
    %p157 = scmp.eq.s32.totalorder %s15, 2
    %p158 = por %p156, %p157
    %p159 = scmp.ne.s32.totalorder %s151, %s154
    %p160 = scmp.eq.s32.totalorder %s15, 0
    %p161 = por %p159, %p160
    %p162 = scmp.ne.s32.totalorder %s151, %s154
    %p163 = scmp.eq.s32.totalorder %s20, 2
    %p164 = por %p162, %p163
    %p165 = scmp.ne.s32.totalorder %s154, %s155
    %p166 = scmp.eq.s32.totalorder %s20, 0
    %p167 = por %p165, %p166
    %p168 = scmp.ne.s32.totalorder %s154, %s155
    %p169 = scmp.eq.s32.totalorder %s21, 2
    %p170 = por %p168, %p169
    %p172 = scmp.ne.s32.totalorder %s155, %s171
    %p173 = scmp.eq.s32.totalorder %s21, 0
    %p174 = por %p172, %p173
    %s175 = ssub.s32 %s15, %s22
    %p176 = scmp.eq.s32.totalorder %s175, 0
    %s178 = sadd.s32 %s177, 1
    %s179 = scalar_select %p176, %s177, %s178
    %p182 = pneg %p176
    %p183 = scmp.eq.s32.totalorder %s15, 2
    %p184 = por %p182, %p183
    %p185 = scmp.ne.s32.totalorder %s177, %s180
    %p186 = scmp.eq.s32.totalorder %s15, 0
    %p187 = por %p185, %p186
    %p188 = scmp.ne.s32.totalorder %s177, %s180
    %p189 = scmp.eq.s32.totalorder %s20, 2
    %p190 = por %p188, %p189
    %p191 = scmp.ne.s32.totalorder %s180, %s181
    %p192 = scmp.eq.s32.totalorder %s20, 0
    %p193 = por %p191, %p192
    %p194 = scmp.ne.s32.totalorder %s180, %s181
    %p195 = scmp.eq.s32.totalorder %s21, 2
    %p196 = por %p194, %p195
    %p198 = scmp.ne.s32.totalorder %s181, %s197
    %p199 = scmp.eq.s32.totalorder %s21, 0
    %p200 = por %p198, %p199
    %s202 = sadd.s32 %s201, 1
    %p205 = scmp.eq.s32.totalorder %s15, 2
    %p206 = scmp.ne.s32.totalorder %s201, %s203
    %p207 = scmp.eq.s32.totalorder %s15, 0
    %p208 = por %p206, %p207
    %p209 = scmp.ne.s32.totalorder %s201, %s203
    %p210 = scmp.eq.s32.totalorder %s20, 2
    %p211 = por %p209, %p210
    %p212 = scmp.ne.s32.totalorder %s203, %s204
    %p213 = scmp.eq.s32.totalorder %s20, 0
    %p214 = por %p212, %p213
    %p215 = scmp.ne.s32.totalorder %s203, %s204
    %p216 = scmp.eq.s32.totalorder %s21, 2
    %p217 = por %p215, %p216
    %p219 = scmp.ne.s32.totalorder %s204, %s218
    %p220 = scmp.eq.s32.totalorder %s21, 0
    %p221 = por %p219, %p220
    %s222 = ssub.s32 %s15, %s22
    %p223 = scmp.eq.s32.totalorder %s222, 0
    %s225 = sadd.s32 %s224, 1
    %s226 = scalar_select %p223, %s224, %s225
    %p229 = pneg %p223
    %p230 = scmp.eq.s32.totalorder %s15, 2
    %p231 = por %p229, %p230
    %p232 = scmp.ne.s32.totalorder %s224, %s227
    %p233 = scmp.eq.s32.totalorder %s15, 0
    %p234 = por %p232, %p233
    %p235 = scmp.ne.s32.totalorder %s224, %s227
    %p236 = scmp.eq.s32.totalorder %s20, 2
    %p237 = por %p235, %p236
    %p238 = scmp.ne.s32.totalorder %s227, %s228
    %p239 = scmp.eq.s32.totalorder %s20, 0
    %p240 = por %p238, %p239
    %p241 = scmp.ne.s32.totalorder %s227, %s228
    %p242 = scmp.eq.s32.totalorder %s21, 2
    %p243 = por %p241, %p242
    %p245 = scmp.ne.s32.totalorder %s228, %s244
    %p246 = scmp.eq.s32.totalorder %s21, 0
    %p247 = por %p245, %p246
    %p248 = scmp.le.s32.totalorder 1, %s15
    %p249 = scmp.lt.s32.totalorder %s15, 4
    %p250 = pnand %p248, %p249
    %p251 = pneg %p250
    // Predicated region
    $region9: #{rw_gnn_forward.2} parent=5 // pred_check
      _
    $region10: #{rw_gnn_forward.2} parent=5 // pred_check_branch
      %253 = sbr.rel (%p250) target = $region12
    $region11: #{rw_gnn_forward.2} parent=5 // pred_region
      %s254 = ssub.s32 %s15, 1
      // Predicated region
      $region13: #{rw_gnn_forward.2} parent=11 // pred_check
        %p255 = pneg %p36
      $region14: #{rw_gnn_forward.2} parent=11 // pred_check_branch
        %257 = sbr.rel (%p255) target = $region16
      $region15: #{rw_gnn_forward.2} parent=11 // pred_region
        _
      $region16: #{rw_gnn_forward.2} parent=11 // pred_fallthru
        _
      // Predicated region
      $region17: #{rw_gnn_forward.2} parent=11 // pred_check
        %p258 = pneg %p57
      $region18: #{rw_gnn_forward.2} parent=11 // pred_check_branch
        %260 = sbr.rel (%p258) target = $region20
      $region19: #{rw_gnn_forward.2} parent=11 // pred_region
        _
      $region20: #{rw_gnn_forward.2} parent=11 // pred_fallthru
        _
      // Predicated region
      $region21: #{rw_gnn_forward.2} parent=11 // pred_check
        %p261 = pneg %p78
      $region22: #{rw_gnn_forward.2} parent=11 // pred_check_branch
        %263 = sbr.rel (%p261) target = $region24
      $region23: #{rw_gnn_forward.2} parent=11 // pred_region
        _
      $region24: #{rw_gnn_forward.2} parent=11 // pred_fallthru
        _
      // Predicated region
      $region25: #{rw_gnn_forward.2} parent=11 // pred_check
        %p264 = pneg %p99
      $region26: #{rw_gnn_forward.2} parent=11 // pred_check_branch
        %266 = sbr.rel (%p264) target = $region28
      $region27: #{rw_gnn_forward.2} parent=11 // pred_region
        _
      $region28: #{rw_gnn_forward.2} parent=11 // pred_fallthru
        _
      // Predicated region
      $region29: #{rw_gnn_forward.2} parent=11 // pred_check
        %p267 = pneg %p120
      $region30: #{rw_gnn_forward.2} parent=11 // pred_check_branch
        %269 = sbr.rel (%p267) target = $region32
      $region31: #{rw_gnn_forward.2} parent=11 // pred_region
        _
      $region32: #{rw_gnn_forward.2} parent=11 // pred_fallthru
        _
      // Predicated region
      $region33: #{rw_gnn_forward.2} parent=11 // pred_check
        %p270 = pneg %p141
      $region34: #{rw_gnn_forward.2} parent=11 // pred_check_branch
        %272 = sbr.rel (%p270) target = $region36
      $region35: #{rw_gnn_forward.2} parent=11 // pred_region
        _
      $region36: #{rw_gnn_forward.2} parent=11 // pred_fallthru
        _
      // Predicated region
      $region37: #{rw_gnn_forward.2} parent=11 // pred_check
        %p273 = pneg %p214
      $region38: #{rw_gnn_forward.2} parent=11 // pred_check_branch
        %275 = sbr.rel (%p273) target = $region40
      $region39: #{rw_gnn_forward.2} parent=11 // pred_region
        _
      $region40: #{rw_gnn_forward.2} parent=11 // pred_fallthru
        _
    $region12: #{rw_gnn_forward.2} parent=5 // pred_fallthru
      _
    %p276 = scmp.lt.s32.totalorder %s15, 3
    // Predicated region
    $region41: #{rw_gnn_forward.2} parent=5 // pred_check
      %p277 = pneg %p276
    $region42: #{rw_gnn_forward.2} parent=5 // pred_check_branch
      %279 = sbr.rel (%p277) target = $region44
    $region43: #{rw_gnn_forward.2} parent=5 // pred_region
      // Predicated region
      $region45: #{rw_gnn_forward.2} parent=43 // pred_check
        %p280 = pneg %p161
      $region46: #{rw_gnn_forward.2} parent=43 // pred_check_branch
        %282 = sbr.rel (%p280) target = $region48
      $region47: #{rw_gnn_forward.2} parent=43 // pred_region
        %p283 = scmp.lt.s32.totalorder %s15, 2
        %s284 = scalar_select %p283, %s15, 2
        %s285 = smul.addr %s284, 4
        %s286 = smul.addr %s285, 4
        %s287 = scalar_lea.vmem %s6, %s286
      $region48: #{rw_gnn_forward.2} parent=43 // pred_fallthru
        _
      // Predicated region
      $region49: #{rw_gnn_forward.2} parent=43 // pred_check
        %p288 = pneg %p187
      $region50: #{rw_gnn_forward.2} parent=43 // pred_check_branch
        %290 = sbr.rel (%p288) target = $region52
      $region51: #{rw_gnn_forward.2} parent=43 // pred_region
        %p291 = scmp.lt.s32.totalorder %s15, 2
        %s292 = scalar_select %p291, %s15, 2
        %s293 = scalar_lea.vmem %s7, %s292
      $region52: #{rw_gnn_forward.2} parent=43 // pred_fallthru
        _
    $region44: #{rw_gnn_forward.2} parent=5 // pred_fallthru
      _
    %p294 = scmp.le.s32.totalorder 1, %s15
    %p295 = scmp.lt.s32.totalorder %s15, 4
    %p296 = pnand %p294, %p295
    %p297 = pneg %p296
    // Predicated region
    $region53: #{rw_gnn_forward.2} parent=5 // pred_check
      _
    $region54: #{rw_gnn_forward.2} parent=5 // pred_check_branch
      %299 = sbr.rel (%p296) target = $region56
    $region55: #{rw_gnn_forward.2} parent=5 // pred_region
      %s300 = ssub.s32 %s15, 1
      %p301 = pneg %p36
      %p302 = pneg %p33
      %p303 = pneg %p57
      %p304 = pneg %p54
      %p305 = pneg %p78
      %p306 = pneg %p75
      %p307 = pneg %p99
      %p308 = pneg %p96
      %p309 = pneg %p120
      %p310 = pneg %p117
      %p311 = pneg %p141
      %p312 = pneg %p138
      %p313 = scmp.lt.s32.totalorder %s20, 2
      %s314 = scalar_select %p313, %s20, 2
      %s315 = smul.addr %s314, 4
      %s316 = smul.addr %s315, 4
      %s317 = scalar_lea.vmem %s6, %s316
      %p318 = pneg %p167
      %p319 = pneg %p164
      %p320 = scmp.lt.s32.totalorder %s20, 2
      %s321 = scalar_select %p320, %s20, 2
      %s322 = scalar_lea.vmem %s7, %s321
      %p323 = pneg %p193
      %p324 = pneg %p190
      %p325 = pneg %p214
      %p326 = pneg %p211
      %p327 = pneg %p240
      %p328 = pneg %p237
      %p329 = scmp.lt.s32.totalorder %s20, 2
      %s330 = scalar_select %p329, %s20, 2
      %s331 = smul.addr %s330, 4
      %s332 = scalar_lea.vmem %s9, %s331
      %p333 = scmp.lt.s32.totalorder %s20, 2
      %s334 = scalar_select %p333, %s20, 2
      %s335 = smul.addr %s334, 4
      %s336 = smul.addr %s335, 4
      %s337 = scalar_lea.vmem %s6, %s336
      %p338 = scmp.lt.s32.totalorder %s20, 2
      %s339 = scalar_select %p338, %s20, 2
      %s340 = scalar_lea.vmem %s7, %s339
      %p341 = scmp.lt.s32.totalorder %s20, 2
      %s342 = scalar_select %p341, %s20, 2
      %s343 = smul.addr %s342, 4
      %s344 = scalar_lea.vmem %s9, %s343
      %p346 = scmp.eq.s32.totalorder %s20, 0
      // Predicated region
      $region57: #{rw_gnn_forward.2} parent=55 // pred_check
        %p347 = pneg %p346
      $region58: #{rw_gnn_forward.2} parent=55 // pred_check_branch
        %349 = sbr.rel (%p347) target = $region60
      $region59: #{rw_gnn_forward.2} parent=55 // pred_region
        %v350 = vld [vmem:[%s0] sm:$0xf]
        %v351 = vld [vmem:[%s0 + $0x4] sm:$0xf]
        %v352 = vld [vmem:[%s0 + $0x8] sm:$0x3]
        %v353 = vld [vmem:[%s1] sm:$0xf]
        %v354 = vld [vmem:[%s2] sm:$0x1]
        %v356 = vlaneseq
        %v357 = vshrl.u32 %v356, 7
        %v358 = vsub.s32 0, %v357
        %v359 = vrot.slane %v354, %v358
        %v364 = vunpack.c.l.b16 %v350
        %v365 = vunpack.c.l.b16 %v351
        %v366 = vunpack.c.l.b16 %v352
        %v367 = vpack.c.b16 %v365, %v364
        %v368 = vpack.c.b16 %v366, %v366
        %vm369 = vcmask 64512
        %v371 = vsel %vm369, %v367, 0
        %v374 = vsel %vm369, %v368, 0
        %vm376 = vcmask 1043456
        %v378 = vsel %vm376, %v353, 0
        %380 = vmatprep.subr.bf16.mxu0 0
        %381 = vmatpush1.bf16.msra.mxu0 %v378
        %382 = vmatprep.subr.bf16.mxu0 0
        %383 = vmatpush1.bf16.msra.mxu0 0
        %384 = vmatprep.subr.bf16.mxu0 0
        %385 = vmatpush1.bf16.msra.mxu0 0
        %386 = vmatprep.subr.bf16.mxu0 0
        %387 = vmatpush1.bf16.msra.mxu0 0
        %388 = vmatprep.subr.bf16.mxu0 0
        %389 = vmatpush1.bf16.msra.mxu0 0
        %390 = vmatprep.subr.bf16.mxu0 0
        %391 = vmatpush1.bf16.msra.mxu0 0
        %392 = vmatprep.subr.bf16.mxu0 0
        %393 = vmatpush1.bf16.msra.mxu0 0
        %394 = vmatprep.subr.bf16.mxu0 0
        %395 = vmatpush1.bf16.msra.mxu0 0
        %396 = vmatprep.subr.bf16.mxu0 0
        %397 = vmatpush1.bf16.msra.mxu0 0
        %398 = vmatprep.subr.bf16.mxu0 0
        %399 = vmatpush1.bf16.msra.mxu0 0
        %400 = vmatprep.subr.bf16.mxu0 0
        %401 = vmatpush1.bf16.msra.mxu0 0
        %402 = vmatprep.subr.bf16.mxu0 0
        %403 = vmatpush1.bf16.msra.mxu0 0
        %404 = vmatprep.subr.bf16.mxu0 0
        %405 = vmatpush1.bf16.msra.mxu0 0
        %406 = vmatprep.subr.bf16.mxu0 0
        %407 = vmatpush1.bf16.msra.mxu0 0
        %408 = vmatprep.subr.bf16.mxu0 0
        %409 = vmatpush1.bf16.msra.mxu0 0
        %410 = vmatprep.subr.bf16.mxu0 0
        %411 = vmatpush1.bf16.msra.mxu0 0
        %412 = vmatprep.mubr.bf16.mxu0 0
        %413 = vmatmul.mubr.bf16.gmra.mrb[0].mxu0 %v371
        %v414 = vpop.f32.mrb[0].mxu0
        %v415 = vadd.f32 %v359, %v414
        %v416 = vpop.f32.mrb[0].mxu0
        %v417 = vpop.f32.mrb[0].mxu0
        %v418 = vadd.f32 %v359, %v417
        %v419 = vpop.f32.mrb[0].mxu0
        %420 = vmatprep.mubr.bf16.mxu0 0
        %421 = vmatmul.mubr.bf16.gmra.mrb[0].mxu0 %v374
        %v422 = vpop.f32.mrb[0].mxu0
        %v423 = vadd.f32 %v359, %v422
        %v424 = vpop.f32.mrb[0].mxu0
        %v425 = vpop.f32.mrb[0].mxu0
        %v426 = vpop.f32.mrb[0].mxu0
        %427 = vdwg.mxu0
        %v428 = vxor.u32 %v415, 2147483648
        %v429 = vxor.u32 %v418, 2147483648
        %v430 = vxor.u32 %v423, 2147483648
        %v431 = vmul.f32 %v428, 1.442695
        %v432 = vpow.pop %v431
        %v433 = vmul.f32 %v429, 1.442695
        %v434 = vpow.pop %v433
        %v435 = vmul.f32 %v430, 1.442695
        %v436 = vpow.pop %v435
        %v437 = vadd.f32 %v432, 1.0
        %v438 = vadd.f32 %v434, 1.0
        %v439 = vadd.f32 %v436, 1.0
        %v440 = vrcp.pop %v437
        %v441 = vmul.f32 1.0, %v440
        %v442 = vrcp.pop %v438
        %v443 = vmul.f32 1.0, %v442
        %v444 = vrcp.pop %v439
        %v445 = vmul.f32 1.0, %v444
        %v446 = vpack.c.bf16 %v443, %v441
        %v447 = vpack.c.bf16 %v445, %v445
        %v450 = vunpack.c.l.b16 %v446
        %v451 = vunpack.c.h.b16 %v446
        %v452 = vunpack.c.l.b16 %v447
        %v453 = vpack.c.b16 %v450, %v450
        %v454 = vpack.c.b16 %v451, %v451
        %v455 = vpack.c.b16 %v452, %v452
        %vm459 = vcmask 257024
        %460 = vst.msk [vmem:[#allocation2] sm:$0xf] %vm459, %v453
        %461 = vst.msk [vmem:[#allocation2 + $0x4] sm:$0xf] %vm459, %v454
        %vm462 = vcmask 254976
        %463 = vst.msk [vmem:[#allocation2 + $0x8] sm:$0x3] %vm462, %v455
        %v464 = vld [vmem:[%s3] sm:$0xff]
        %v465 = vld [vmem:[%s3 + $0x8] sm:$0xff]
        %v466 = vld [vmem:[%s3 + $0x10] sm:$0xff]
        %vm467 = vcmask 261120
        %468 = vst.msk [vmem:[#allocation3] sm:$0xff] %vm467, %v464
        %469 = vst.msk [vmem:[#allocation3 + $0x8] sm:$0xff] %vm467, %v465
        %470 = vst.msk [vmem:[#allocation3 + $0x10] sm:$0xff] %vm467, %v466
        %v471 = vld [vmem:[%s3] sm:$0xff]
        %v472 = vld [vmem:[%s3 + $0x8] sm:$0xff]
        %v473 = vld [vmem:[%s3 + $0x10] sm:$0xff]
        %v474 = vpack.c.bf16 %v472, %v471
        %v475 = vpack.c.bf16 %v473, %v473
        %v477 = vsel %vm467, %v446, 0
        %v480 = vsel %vm467, %v447, 0
        %v483 = vsel %vm467, %v474, 0
        %v486 = vsel %vm467, %v475, 0
        %488 = vmatprep.subr.bf16.mxu0 0
        %489 = vmatpush1.bf16.xpose.msra.mxu0 %v483
        %490 = vmatprep.subr.bf16.mxu0 0
        %491 = vmatpush1.bf16.xpose.msra.mxu0 %v486
        %492 = vmatprep.subr.bf16.mxu0 0
        %493 = vmatpush1.bf16.xpose.msra.mxu0 0
        %494 = vmatprep.subr.bf16.mxu0 0
        %495 = vmatpush1.bf16.xpose.msra.mxu0 0
        %496 = vmatprep.subr.bf16.mxu0 0
        %497 = vmatpush1.bf16.xpose.msra.mxu0 0
        %498 = vmatprep.subr.bf16.mxu0 0
        %499 = vmatpush1.bf16.xpose.msra.mxu0 0
        %500 = vmatprep.subr.bf16.mxu0 0
        %501 = vmatpush1.bf16.xpose.msra.mxu0 0
        %502 = vmatprep.subr.bf16.mxu0 0
        %503 = vmatpush1.bf16.xpose.msra.mxu0 0
        %504 = vmatprep.subr.bf16.mxu0 0
        %505 = vmatpush1.bf16.xpose.msra.mxu0 0
        %506 = vmatprep.subr.bf16.mxu0 0
        %507 = vmatpush1.bf16.xpose.msra.mxu0 0
        %508 = vmatprep.subr.bf16.mxu0 0
        %509 = vmatpush1.bf16.xpose.msra.mxu0 0
        %510 = vmatprep.subr.bf16.mxu0 0
        %511 = vmatpush1.bf16.xpose.msra.mxu0 0
        %512 = vmatprep.subr.bf16.mxu0 0
        %513 = vmatpush1.bf16.xpose.msra.mxu0 0
        %514 = vmatprep.subr.bf16.mxu0 0
        %515 = vmatpush1.bf16.xpose.msra.mxu0 0
        %516 = vmatprep.subr.bf16.mxu0 0
        %517 = vmatpush1.bf16.xpose.msra.mxu0 0
        %518 = vmatprep.subr.bf16.mxu0 0
        %519 = vmatpush1.bf16.xpose.msra.mxu0 0
        %520 = vmatprep.mubr.bf16.mxu0 0
        %521 = vmatmul.mubr.bf16.gmra.mrb[0].mxu0 %v477
        %v522 = vpop.f32.mrb[0].mxu0
        %v523 = vadd.f32 0.0, %v522
        %v524 = vpop.f32.mrb[0].mxu0
        %v525 = vpop.f32.mrb[0].mxu0
        %v526 = vadd.f32 0.0, %v525
        %v527 = vpop.f32.mrb[0].mxu0
        %528 = vmatprep.mubr.bf16.mxu0 0
        %529 = vmatmul.mubr.bf16.gmra.mrb[0].mxu0 %v480
        %v530 = vpop.f32.mrb[0].mxu0
        %v531 = vadd.f32 0.0, %v530
        %v532 = vpop.f32.mrb[0].mxu0
        %v533 = vpop.f32.mrb[0].mxu0
        %v534 = vpop.f32.mrb[0].mxu0
        %535 = vdwg.mxu0
        %v536 = vpack.c.bf16 %v526, %v523
        %v537 = vpack.c.bf16 %v531, %v531
        %v540 = vunpack.c.l.b16 %v536
        %v541 = vunpack.c.h.b16 %v536
        %v542 = vunpack.c.l.b16 %v537
        %v543 = vpack.c.b16 %v540, %v540
        %v544 = vpack.c.b16 %v541, %v541
        %v545 = vpack.c.b16 %v542, %v542
        %vm549 = vcmask 191488
        %550 = vst.msk [vmem:[#allocation4] sm:$0xf] %vm549, %v543
        %551 = vst.msk [vmem:[#allocation4 + $0x4] sm:$0xf] %vm549, %v544
        %vm552 = vcmask 189440
        %553 = vst.msk [vmem:[#allocation4 + $0x8] sm:$0x3] %vm552, %v545
        %v554 = vmul.f32 %v523, %v523
        %v555 = vmul.f32 %v526, %v526
        %v556 = vmul.f32 %v531, %v531
        %v557 = vld [vmem:[%s8] sm:$0x3]
        %v558 = vpack.c.bf16 %v555, %v554
        %v559 = vpack.c.bf16 %v556, %v556
        %vm560 = vcmask 162816
        %v562 = vsel %vm560, %v557, 0
        %vm564 = vcmask 1041408
        %v566 = vsel %vm564, %v559, 0
        %568 = vmatprep.subr.bf16.mxu0 0
        %569 = vmatpush1.bf16.msra.mxu0 %v558
        %570 = vmatprep.subr.bf16.mxu0 0
        %571 = vmatpush1.bf16.msra.mxu0 %v566
        %572 = vmatprep.subr.bf16.mxu0 0
        %573 = vmatpush1.bf16.msra.mxu0 0
        %574 = vmatprep.subr.bf16.mxu0 0
        %575 = vmatpush1.bf16.msra.mxu0 0
        %576 = vmatprep.subr.bf16.mxu0 0
        %577 = vmatpush1.bf16.msra.mxu0 0
        %578 = vmatprep.subr.bf16.mxu0 0
        %579 = vmatpush1.bf16.msra.mxu0 0
        %580 = vmatprep.subr.bf16.mxu0 0
        %581 = vmatpush1.bf16.msra.mxu0 0
        %582 = vmatprep.subr.bf16.mxu0 0
        %583 = vmatpush1.bf16.msra.mxu0 0
        %584 = vmatprep.subr.bf16.mxu0 0
        %585 = vmatpush1.bf16.msra.mxu0 0
        %586 = vmatprep.subr.bf16.mxu0 0
        %587 = vmatpush1.bf16.msra.mxu0 0
        %588 = vmatprep.subr.bf16.mxu0 0
        %589 = vmatpush1.bf16.msra.mxu0 0
        %590 = vmatprep.subr.bf16.mxu0 0
        %591 = vmatpush1.bf16.msra.mxu0 0
        %592 = vmatprep.subr.bf16.mxu0 0
        %593 = vmatpush1.bf16.msra.mxu0 0
        %594 = vmatprep.subr.bf16.mxu0 0
        %595 = vmatpush1.bf16.msra.mxu0 0
        %596 = vmatprep.subr.bf16.mxu0 0
        %597 = vmatpush1.bf16.msra.mxu0 0
        %598 = vmatprep.subr.bf16.mxu0 0
        %599 = vmatpush1.bf16.msra.mxu0 0
        %600 = vmatprep.mubr.bf16.mxu0 0
        %601 = vmatmul.mubr.bf16.gmra.mrb[0].mxu0 %v562
        %v602 = vpop.f32.mrb[0].mxu0
        %v603 = vadd.f32 0.0, %v602
        %v604 = vpop.f32.mrb[0].mxu0
        %v605 = vpop.f32.mrb[0].mxu0
        %v606 = vpop.f32.mrb[0].mxu0
        %607 = vdwg.mxu0
        %vm608 = vcmask 190464
        %609 = vst.msk [vmem:[%s344] sm:$0x7] %vm608, %v603
      $region60: #{rw_gnn_forward.2} parent=55 // pred_fallthru
        _
      %p610 = scmp.gt.s32.totalorder %s20, 0
      // Predicated region
      $region61: #{rw_gnn_forward.2} parent=55 // pred_check
        %p611 = pneg %p610
      $region62: #{rw_gnn_forward.2} parent=55 // pred_check_branch
        %613 = sbr.rel (%p611) target = $region64
      $region63: #{rw_gnn_forward.2} parent=55 // pred_region
        %v614 = vld [vmem:[%s4] sm:$0xf]
        %v615 = vld [vmem:[%s4 + $0x4] sm:$0xf]
        %v616 = vld [vmem:[%s4 + $0x8] sm:$0xf]
        %v617 = vld [vmem:[#allocation3] sm:$0xff]
        %v618 = vld [vmem:[#allocation3 + $0x8] sm:$0xff]
        %v619 = vld [vmem:[#allocation3 + $0x10] sm:$0xff]
        %v620 = vpack.c.bf16 %v618, %v617
        %v621 = vpack.c.bf16 %v619, %v619
        %v625 = vunpack.c.l.b16 %v614
        %v626 = vunpack.c.l.b16 %v615
        %v627 = vunpack.c.l.b16 %v616
        %v628 = vpack.c.b16 %v626, %v625
        %v629 = vpack.c.b16 %v627, %v627
        %vm630 = vcmask 195584
        %v632 = vsel %vm630, %v628, 0
        %v635 = vsel %vm630, %v629, 0
        %vm637 = vcmask 1043456
        %v639 = vsel %vm637, %v621, 0
        %641 = vmatprep.subr.bf16.mxu0 0
        %642 = vmatpush1.bf16.msra.mxu0 %v620
        %643 = vmatprep.subr.bf16.mxu0 0
        %644 = vmatpush1.bf16.msra.mxu0 %v639
        %645 = vmatprep.subr.bf16.mxu0 0
        %646 = vmatpush1.bf16.msra.mxu0 0
        %647 = vmatprep.subr.bf16.mxu0 0
        %648 = vmatpush1.bf16.msra.mxu0 0
        %649 = vmatprep.subr.bf16.mxu0 0
        %650 = vmatpush1.bf16.msra.mxu0 0
        %651 = vmatprep.subr.bf16.mxu0 0
        %652 = vmatpush1.bf16.msra.mxu0 0
        %653 = vmatprep.subr.bf16.mxu0 0
        %654 = vmatpush1.bf16.msra.mxu0 0
        %655 = vmatprep.subr.bf16.mxu0 0
        %656 = vmatpush1.bf16.msra.mxu0 0
        %657 = vmatprep.subr.bf16.mxu0 0
        %658 = vmatpush1.bf16.msra.mxu0 0
        %659 = vmatprep.subr.bf16.mxu0 0
        %660 = vmatpush1.bf16.msra.mxu0 0
        %661 = vmatprep.subr.bf16.mxu0 0
        %662 = vmatpush1.bf16.msra.mxu0 0
        %663 = vmatprep.subr.bf16.mxu0 0
        %664 = vmatpush1.bf16.msra.mxu0 0
        %665 = vmatprep.subr.bf16.mxu0 0
        %666 = vmatpush1.bf16.msra.mxu0 0
        %667 = vmatprep.subr.bf16.mxu0 0
        %668 = vmatpush1.bf16.msra.mxu0 0
        %669 = vmatprep.subr.bf16.mxu0 0
        %670 = vmatpush1.bf16.msra.mxu0 0
        %671 = vmatprep.subr.bf16.mxu0 0
        %672 = vmatpush1.bf16.msra.mxu0 0
        %673 = vmatprep.mubr.bf16.mxu0 0
        %674 = vmatmul.mubr.bf16.gmra.mrb[0].mxu0 %v632
        %v675 = vpop.f32.mrb[0].mxu0
        %v676 = vadd.f32 0.0, %v675
        %v677 = vpop.f32.mrb[0].mxu0
        %v678 = vpop.f32.mrb[0].mxu0
        %v679 = vadd.f32 0.0, %v678
        %v680 = vpop.f32.mrb[0].mxu0
        %681 = vmatprep.mubr.bf16.mxu0 0
        %682 = vmatmul.mubr.bf16.gmra.mrb[0].mxu0 %v635
        %v683 = vpop.f32.mrb[0].mxu0
        %v684 = vadd.f32 0.0, %v683
        %v685 = vpop.f32.mrb[0].mxu0
        %v686 = vpop.f32.mrb[0].mxu0
        %v687 = vpop.f32.mrb[0].mxu0
        %688 = vdwg.mxu0
        %vm689 = vcmask 261120
        %690 = vst.msk [vmem:[#allocation3] sm:$0xff] %vm689, %v676
        %691 = vst.msk [vmem:[#allocation3 + $0x8] sm:$0xff] %vm689, %v679
        %692 = vst.msk [vmem:[#allocation3 + $0x10] sm:$0xff] %vm689, %v684
        %v693 = vpack.c.bf16 %v679, %v676
        %v694 = vpack.c.bf16 %v684, %v684
        %v695 = vld [vmem:[%s5] sm:$0xf]
        %v696 = vld [vmem:[%s5 + $0x4] sm:$0xf]
        %v697 = vld [vmem:[%s5 + $0x8] sm:$0x3]
        %v698 = vld [vmem:[#allocation2] sm:$0xf]
        %v699 = vld [vmem:[#allocation2 + $0x4] sm:$0xf]
        %v700 = vld [vmem:[#allocation2 + $0x8] sm:$0x3]
        %v704 = vunpack.c.l.b16 %v695
        %v705 = vunpack.c.l.b16 %v696
        %v706 = vunpack.c.l.b16 %v697
        %v707 = vpack.c.b16 %v705, %v704
        %v708 = vpack.c.b16 %v706, %v706
        %v712 = vunpack.c.l.b16 %v698
        %v713 = vunpack.c.l.b16 %v699
        %v714 = vunpack.c.l.b16 %v700
        %v715 = vpack.c.b16 %v713, %v712
        %v716 = vpack.c.b16 %v714, %v714
        %vm718 = vcmask 162816
        %v720 = vsel %vm718, %v707, 0
        %v723 = vsel %vm718, %v708, 0
        %vm725 = vcmask 1041408
        %v727 = vsel %vm725, %v716, 0
        %729 = vmatprep.subr.bf16.mxu0 0
        %730 = vmatpush1.bf16.msra.mxu0 %v715
        %731 = vmatprep.subr.bf16.mxu0 0
        %732 = vmatpush1.bf16.msra.mxu0 %v727
        %733 = vmatprep.subr.bf16.mxu0 0
        %734 = vmatpush1.bf16.msra.mxu0 0
        %735 = vmatprep.subr.bf16.mxu0 0
        %736 = vmatpush1.bf16.msra.mxu0 0
        %737 = vmatprep.subr.bf16.mxu0 0
        %738 = vmatpush1.bf16.msra.mxu0 0
        %739 = vmatprep.subr.bf16.mxu0 0
        %740 = vmatpush1.bf16.msra.mxu0 0
        %741 = vmatprep.subr.bf16.mxu0 0
        %742 = vmatpush1.bf16.msra.mxu0 0
        %743 = vmatprep.subr.bf16.mxu0 0
        %744 = vmatpush1.bf16.msra.mxu0 0
        %745 = vmatprep.subr.bf16.mxu0 0
        %746 = vmatpush1.bf16.msra.mxu0 0
        %747 = vmatprep.subr.bf16.mxu0 0
        %748 = vmatpush1.bf16.msra.mxu0 0
        %749 = vmatprep.subr.bf16.mxu0 0
        %750 = vmatpush1.bf16.msra.mxu0 0
        %751 = vmatprep.subr.bf16.mxu0 0
        %752 = vmatpush1.bf16.msra.mxu0 0
        %753 = vmatprep.subr.bf16.mxu0 0
        %754 = vmatpush1.bf16.msra.mxu0 0
        %755 = vmatprep.subr.bf16.mxu0 0
        %756 = vmatpush1.bf16.msra.mxu0 0
        %757 = vmatprep.subr.bf16.mxu0 0
        %758 = vmatpush1.bf16.msra.mxu0 0
        %759 = vmatprep.subr.bf16.mxu0 0
        %760 = vmatpush1.bf16.msra.mxu0 0
        %761 = vmatprep.mubr.bf16.mxu0 0
        %762 = vmatmul.mubr.bf16.gmra.mrb[0].mxu0 %v720
        %v763 = vpop.f32.mrb[0].mxu0
        %v764 = vadd.f32 0.0, %v763
        %v765 = vpop.f32.mrb[0].mxu0
        %v766 = vpop.f32.mrb[0].mxu0
        %v767 = vadd.f32 0.0, %v766
        %v768 = vpop.f32.mrb[0].mxu0
        %769 = vmatprep.mubr.bf16.mxu0 0
        %770 = vmatmul.mubr.bf16.gmra.mrb[0].mxu0 %v723
        %v771 = vpop.f32.mrb[0].mxu0
        %v772 = vadd.f32 0.0, %v771
        %v773 = vpop.f32.mrb[0].mxu0
        %v774 = vpop.f32.mrb[0].mxu0
        %v775 = vpop.f32.mrb[0].mxu0
        %776 = vdwg.mxu0
        %v777 = vld [vmem:[%s337] sm:$0xf]
        %v778 = vld [vmem:[%s337 + $0x4] sm:$0xf]
        %v779 = vld [vmem:[%s337 + $0x8] sm:$0xf]
        %v780 = vld [vmem:[%s337 + $0xc] sm:$0xf]
        %v785 = vunpack.c.l.b16 %v777
        %v786 = vunpack.c.l.b16 %v778
        %v787 = vunpack.c.l.b16 %v779
        %v788 = vunpack.c.l.b16 %v780
        %v789 = vpack.c.b16 %v786, %v785
        %v790 = vpack.c.b16 %v788, %v787
        %v792 = vsel %vm689, %v789, 0
        %v795 = vsel %vm689, %v790, 0
        %v798 = vsel %vm689, %v693, 0
        %v801 = vsel %vm689, %v694, 0
        %803 = vmatprep.subr.bf16.mxu0 0
        %804 = vmatpush1.bf16.xpose.msra.mxu0 %v798
        %805 = vmatprep.subr.bf16.mxu0 0
        %806 = vmatpush1.bf16.xpose.msra.mxu0 %v801
        %807 = vmatprep.subr.bf16.mxu0 0
        %808 = vmatpush1.bf16.xpose.msra.mxu0 0
        %809 = vmatprep.subr.bf16.mxu0 0
        %810 = vmatpush1.bf16.xpose.msra.mxu0 0
        %811 = vmatprep.subr.bf16.mxu0 0
        %812 = vmatpush1.bf16.xpose.msra.mxu0 0
        %813 = vmatprep.subr.bf16.mxu0 0
        %814 = vmatpush1.bf16.xpose.msra.mxu0 0
        %815 = vmatprep.subr.bf16.mxu0 0
        %816 = vmatpush1.bf16.xpose.msra.mxu0 0
        %817 = vmatprep.subr.bf16.mxu0 0
        %818 = vmatpush1.bf16.xpose.msra.mxu0 0
        %819 = vmatprep.subr.bf16.mxu0 0
        %820 = vmatpush1.bf16.xpose.msra.mxu0 0
        %821 = vmatprep.subr.bf16.mxu0 0
        %822 = vmatpush1.bf16.xpose.msra.mxu0 0
        %823 = vmatprep.subr.bf16.mxu0 0
        %824 = vmatpush1.bf16.xpose.msra.mxu0 0
        %825 = vmatprep.subr.bf16.mxu0 0
        %826 = vmatpush1.bf16.xpose.msra.mxu0 0
        %827 = vmatprep.subr.bf16.mxu0 0
        %828 = vmatpush1.bf16.xpose.msra.mxu0 0
        %829 = vmatprep.subr.bf16.mxu0 0
        %830 = vmatpush1.bf16.xpose.msra.mxu0 0
        %831 = vmatprep.subr.bf16.mxu0 0
        %832 = vmatpush1.bf16.xpose.msra.mxu0 0
        %833 = vmatprep.subr.bf16.mxu0 0
        %834 = vmatpush1.bf16.xpose.msra.mxu0 0
        %835 = vmatprep.mubr.bf16.mxu0 0
        %836 = vmatmul.mubr.bf16.gmra.mrb[0].mxu0 %v792
        %v837 = vpop.f32.mrb[0].mxu0
        %v838 = vadd.f32 0.0, %v837
        %v839 = vpop.f32.mrb[0].mxu0
        %v840 = vpop.f32.mrb[0].mxu0
        %v841 = vadd.f32 0.0, %v840
        %v842 = vpop.f32.mrb[0].mxu0
        %843 = vmatprep.mubr.bf16.mxu0 0
        %844 = vmatmul.mubr.bf16.gmra.mrb[0].mxu0 %v795
        %v845 = vpop.f32.mrb[0].mxu0
        %v846 = vadd.f32 0.0, %v845
        %v847 = vpop.f32.mrb[0].mxu0
        %v848 = vpop.f32.mrb[0].mxu0
        %v849 = vadd.f32 0.0, %v848
        %v850 = vpop.f32.mrb[0].mxu0
        %851 = vdwg.mxu0
        %v852 = vpack.c.bf16 %v841, %v838
        %v853 = vpack.c.bf16 %v849, %v846
        %856 = vrot.lane.b32.xlu0 %v852, 32
        %v857 = vpop.permute.xlu0 %856
        %858 = vrot.lane.b32.xlu0 %v853, 32
        %v859 = vpop.permute.xlu0 %858
        %v861 = vsel %vm689, %v789, %v857
        %v864 = vsel %vm689, %v790, %v859
        %v866 = vpack.c.bf16 %v767, %v764
        %v867 = vpack.c.bf16 %v772, %v772
        %v869 = vsel %vm689, %v866, 0
        %v872 = vsel %vm689, %v867, 0
        %874 = vmatprep.subr.bf16.mxu0 0
        %875 = vmatpush1.bf16.msra.mxu0 %v861
        %876 = vmatprep.subr.bf16.mxu0 0
        %877 = vmatpush1.bf16.msra.mxu0 %v864
        %878 = vmatprep.subr.bf16.mxu0 0
        %879 = vmatpush1.bf16.msra.mxu0 0
        %880 = vmatprep.subr.bf16.mxu0 0
        %881 = vmatpush1.bf16.msra.mxu0 0
        %882 = vmatprep.subr.bf16.mxu0 0
        %883 = vmatpush1.bf16.msra.mxu0 0
        %884 = vmatprep.subr.bf16.mxu0 0
        %885 = vmatpush1.bf16.msra.mxu0 0
        %886 = vmatprep.subr.bf16.mxu0 0
        %887 = vmatpush1.bf16.msra.mxu0 0
        %888 = vmatprep.subr.bf16.mxu0 0
        %889 = vmatpush1.bf16.msra.mxu0 0
        %890 = vmatprep.subr.bf16.mxu0 0
        %891 = vmatpush1.bf16.msra.mxu0 0
        %892 = vmatprep.subr.bf16.mxu0 0
        %893 = vmatpush1.bf16.msra.mxu0 0
        %894 = vmatprep.subr.bf16.mxu0 0
        %895 = vmatpush1.bf16.msra.mxu0 0
        %896 = vmatprep.subr.bf16.mxu0 0
        %897 = vmatpush1.bf16.msra.mxu0 0
        %898 = vmatprep.subr.bf16.mxu0 0
        %899 = vmatpush1.bf16.msra.mxu0 0
        %900 = vmatprep.subr.bf16.mxu0 0
        %901 = vmatpush1.bf16.msra.mxu0 0
        %902 = vmatprep.subr.bf16.mxu0 0
        %903 = vmatpush1.bf16.msra.mxu0 0
        %904 = vmatprep.subr.bf16.mxu0 0
        %905 = vmatpush1.bf16.msra.mxu0 0
        %906 = vmatprep.mubr.bf16.mxu0 0
        %907 = vmatmul.mubr.bf16.gmra.mrb[0].mxu0 %v869
        %v908 = vpop.f32.mrb[0].mxu0
        %v909 = vadd.f32 0.0, %v908
        %v910 = vpop.f32.mrb[0].mxu0
        %v911 = vpop.f32.mrb[0].mxu0
        %v912 = vadd.f32 0.0, %v911
        %v913 = vpop.f32.mrb[0].mxu0
        %914 = vmatprep.mubr.bf16.mxu0 0
        %915 = vmatmul.mubr.bf16.gmra.mrb[0].mxu0 %v872
        %v916 = vpop.f32.mrb[0].mxu0
        %v917 = vadd.f32 0.0, %v916
        %v918 = vpop.f32.mrb[0].mxu0
        %v919 = vpop.f32.mrb[0].mxu0
        %v920 = vpop.f32.mrb[0].mxu0
        %921 = vdwg.mxu0
        %v922 = vld [vmem:[%s340] sm:$0x1]
        %v924 = vsel %vm689, %v922, 0
        %v927 = vsel %vm689, %v676, 0
        %v930 = vsel %vm689, %v679, 0
        %v933 = vsel %vm689, %v684, 0
        %935 = vmatprep.subr.mxu0 0.0
        %936 = vmatpush1.xpose.msra.mxu0 %v927
        %937 = vmatprep.subr.mxu0 0.0
        %938 = vmatpush1.xpose.msra.mxu0 %v930
        %939 = vmatprep.subr.mxu0 0.0
        %940 = vmatpush1.xpose.msra.mxu0 %v933
        %941 = vmatprep.subr.mxu0 0.0
        %942 = vmatpush1.xpose.msra.mxu0 0.0
        %943 = vmatprep.subr.mxu0 0.0
        %944 = vmatpush1.xpose.msra.mxu0 0.0
        %945 = vmatprep.subr.mxu0 0.0
        %946 = vmatpush1.xpose.msra.mxu0 0.0
        %947 = vmatprep.subr.mxu0 0.0
        %948 = vmatpush1.xpose.msra.mxu0 0.0
        %949 = vmatprep.subr.mxu0 0.0
        %950 = vmatpush1.xpose.msra.mxu0 0.0
        %951 = vmatprep.subr.mxu0 0.0
        %952 = vmatpush1.xpose.msra.mxu0 0.0
        %953 = vmatprep.subr.mxu0 0.0
        %954 = vmatpush1.xpose.msra.mxu0 0.0
        %955 = vmatprep.subr.mxu0 0.0
        %956 = vmatpush1.xpose.msra.mxu0 0.0
        %957 = vmatprep.subr.mxu0 0.0
        %958 = vmatpush1.xpose.msra.mxu0 0.0
        %959 = vmatprep.subr.mxu0 0.0
        %960 = vmatpush1.xpose.msra.mxu0 0.0
        %961 = vmatprep.subr.mxu0 0.0
        %962 = vmatpush1.xpose.msra.mxu0 0.0
        %963 = vmatprep.subr.mxu0 0.0
        %964 = vmatpush1.xpose.msra.mxu0 0.0
        %965 = vmatprep.subr.mxu0 0.0
        %966 = vmatpush1.xpose.msra.mxu0 0.0
        %967 = vmatprep.subr.mxu0 0.0
        %968 = vmatpush1.xpose.msra.mxu0 0.0
        %969 = vmatprep.subr.mxu0 0.0
        %970 = vmatpush1.xpose.msra.mxu0 0.0
        %971 = vmatprep.subr.mxu0 0.0
        %972 = vmatpush1.xpose.msra.mxu0 0.0
        %973 = vmatprep.subr.mxu0 0.0
        %974 = vmatpush1.xpose.msra.mxu0 0.0
        %975 = vmatprep.subr.mxu0 0.0
        %976 = vmatpush1.xpose.msra.mxu0 0.0
        %977 = vmatprep.subr.mxu0 0.0
        %978 = vmatpush1.xpose.msra.mxu0 0.0
        %979 = vmatprep.subr.mxu0 0.0
        %980 = vmatpush1.xpose.msra.mxu0 0.0
        %981 = vmatprep.subr.mxu0 0.0
        %982 = vmatpush1.xpose.msra.mxu0 0.0
        %983 = vmatprep.subr.mxu0 0.0
        %984 = vmatpush1.xpose.msra.mxu0 0.0
        %985 = vmatprep.subr.mxu0 0.0
        %986 = vmatpush1.xpose.msra.mxu0 0.0
        %987 = vmatprep.subr.mxu0 0.0
        %988 = vmatpush1.xpose.msra.mxu0 0.0
        %989 = vmatprep.subr.mxu0 0.0
        %990 = vmatpush1.xpose.msra.mxu0 0.0
        %991 = vmatprep.subr.mxu0 0.0
        %992 = vmatpush1.xpose.msra.mxu0 0.0
        %993 = vmatprep.subr.mxu0 0.0
        %994 = vmatpush1.xpose.msra.mxu0 0.0
        %995 = vmatprep.subr.mxu0 0.0
        %996 = vmatpush1.xpose.msra.mxu0 0.0
        %997 = vmatprep.subr.mxu0 0.0
        %998 = vmatpush1.xpose.msra.mxu0 0.0
        %999 = vmatprep.mubr.f32.mxu0 0.0
        %1000 = vmatmul.mubr.f32.gmra.mrb[0].mxu0 %v924
        %v1001 = vpop.f32.mrb[0].mxu0
        %v1002 = vadd.f32 0.0, %v1001
        %v1003 = vpop.f32.mrb[0].mxu0
        %1004 = vdwg.mxu0
        %v1005 = vlaneseq
        %v1006 = vshrl.u32 %v1005, 7
        %v1007 = vsub.s32 0, %v1006
        %v1008 = vrot.slane %v922, %v1007
        %v1010 = vadd.f32 %v909, %v1008
        %v1011 = vadd.f32 %v912, %v1008
        %v1012 = vadd.f32 %v917, %v1008
        %v1013 = vlaneseq
        %v1014 = vshrl.u32 %v1013, 7
        %v1015 = vsub.s32 0, %v1014
        %v1016 = vrot.slane %v1002, %v1015
        %1018 = vrot.lane.b32.xlu0 %v1016, 32
        %v1019 = vpop.permute.xlu0 %1018
        %v1021 = vadd.f32 %v909, %v1019
        %v1022 = vadd.f32 %v912, %v1019
        %v1023 = vadd.f32 %v917, %v1019
        %v1024 = vpack.c.bf16 %v1011, %v1010
        %v1025 = vpack.c.bf16 %v1012, %v1012
        %v1028 = vunpack.c.l.b16 %v1024
        %v1029 = vunpack.c.h.b16 %v1024
        %v1030 = vunpack.c.l.b16 %v1025
        %v1031 = vpack.c.b16 %v1028, %v1028
        %v1032 = vpack.c.b16 %v1029, %v1029
        %v1033 = vpack.c.b16 %v1030, %v1030
        %vm1037 = vcmask 257024
        %1038 = vst.msk [vmem:[#allocation2] sm:$0xf] %vm1037, %v1031
        %1039 = vst.msk [vmem:[#allocation2 + $0x4] sm:$0xf] %vm1037, %v1032
        %vm1040 = vcmask 254976
        %1041 = vst.msk [vmem:[#allocation2 + $0x8] sm:$0x3] %vm1040, %v1033
        %v1042 = vld [vmem:[#allocation4] sm:$0xf]
        %v1043 = vld [vmem:[#allocation4 + $0x4] sm:$0xf]
        %v1044 = vld [vmem:[#allocation4 + $0x8] sm:$0x3]
        %v1045 = vunpack.c.l.bf16 %v1042
        %v1046 = vunpack.c.l.bf16 %v1043
        %v1047 = vunpack.c.l.bf16 %v1044
        %1051 = vrot.lane.b32.xlu0 %v1021, 96
        %v1052 = vpop.permute.xlu0 %1051
        %1053 = vrot.lane.b32.xlu0 %v1022, 96
        %v1054 = vpop.permute.xlu0 %1053
        %1055 = vrot.lane.b32.xlu0 %v1023, 96
        %v1056 = vpop.permute.xlu0 %1055
        %v1060 = vmul.f32 %v1045, %v1052
        %v1061 = vmul.f32 %v1046, %v1054
        %v1062 = vmul.f32 %v1047, %v1056
        %v1063 = vld [vmem:[%s8] sm:$0x3]
        %v1064 = vpack.c.bf16 %v1061, %v1060
        %v1065 = vpack.c.bf16 %v1062, %v1062
        %v1067 = vsel %vm718, %v1063, 0
        %v1070 = vsel %vm725, %v1065, 0
        %1072 = vmatprep.subr.bf16.mxu0 0
        %1073 = vmatpush1.bf16.msra.mxu0 %v1064
        %1074 = vmatprep.subr.bf16.mxu0 0
        %1075 = vmatpush1.bf16.msra.mxu0 %v1070
        %1076 = vmatprep.subr.bf16.mxu0 0
        %1077 = vmatpush1.bf16.msra.mxu0 0
        %1078 = vmatprep.subr.bf16.mxu0 0
        %1079 = vmatpush1.bf16.msra.mxu0 0
        %1080 = vmatprep.subr.bf16.mxu0 0
        %1081 = vmatpush1.bf16.msra.mxu0 0
        %1082 = vmatprep.subr.bf16.mxu0 0
        %1083 = vmatpush1.bf16.msra.mxu0 0
        %1084 = vmatprep.subr.bf16.mxu0 0
        %1085 = vmatpush1.bf16.msra.mxu0 0
        %1086 = vmatprep.subr.bf16.mxu0 0
        %1087 = vmatpush1.bf16.msra.mxu0 0
        %1088 = vmatprep.subr.bf16.mxu0 0
        %1089 = vmatpush1.bf16.msra.mxu0 0
        %1090 = vmatprep.subr.bf16.mxu0 0
        %1091 = vmatpush1.bf16.msra.mxu0 0
        %1092 = vmatprep.subr.bf16.mxu0 0
        %1093 = vmatpush1.bf16.msra.mxu0 0
        %1094 = vmatprep.subr.bf16.mxu0 0
        %1095 = vmatpush1.bf16.msra.mxu0 0
        %1096 = vmatprep.subr.bf16.mxu0 0
        %1097 = vmatpush1.bf16.msra.mxu0 0
        %1098 = vmatprep.subr.bf16.mxu0 0
        %1099 = vmatpush1.bf16.msra.mxu0 0
        %1100 = vmatprep.subr.bf16.mxu0 0
        %1101 = vmatpush1.bf16.msra.mxu0 0
        %1102 = vmatprep.subr.bf16.mxu0 0
        %1103 = vmatpush1.bf16.msra.mxu0 0
        %1104 = vmatprep.mubr.bf16.mxu0 0
        %1105 = vmatmul.mubr.bf16.gmra.mrb[0].mxu0 %v1067
        %v1106 = vpop.f32.mrb[0].mxu0
        %v1107 = vadd.f32 0.0, %v1106
        %v1108 = vpop.f32.mrb[0].mxu0
        %v1109 = vpop.f32.mrb[0].mxu0
        %v1110 = vpop.f32.mrb[0].mxu0
        %1111 = vdwg.mxu0
        %vm1112 = vcmask 190464
        %1113 = vst.msk [vmem:[%s344] sm:$0x7] %vm1112, %v1107
      $region64: #{rw_gnn_forward.2} parent=55 // pred_fallthru
        _
      %p1114 = scmp.lt.s32.totalorder %s20, 2
      %s1115 = scalar_select %p1114, %s20, 2
      %s1116 = smul.addr %s1115, 4
      %s1117 = scalar_lea.vmem %s9, %s1116
      // Predicated region
      $region65: #{rw_gnn_forward.2} parent=55 // pred_check
        %p1118 = pneg %p237
      $region66: #{rw_gnn_forward.2} parent=55 // pred_check_branch
        %1120 = sbr.rel (%p1118) target = $region68
      $region67: #{rw_gnn_forward.2} parent=55 // pred_region
        _
      $region68: #{rw_gnn_forward.2} parent=55 // pred_fallthru
        _
    $region56: #{rw_gnn_forward.2} parent=5 // pred_fallthru
      _
    %p1121 = scmp.le.s32.totalorder 2, %s15
    // Predicated region
    $region69: #{rw_gnn_forward.2} parent=5 // pred_check
      %p1122 = pneg %p1121
    $region70: #{rw_gnn_forward.2} parent=5 // pred_check_branch
      %1124 = sbr.rel (%p1122) target = $region72
    $region71: #{rw_gnn_forward.2} parent=5 // pred_region
      %s1125 = ssub.s32 %s15, 2
      // Predicated region
      $region73: #{rw_gnn_forward.2} parent=71 // pred_check
        %p1126 = pneg %p243
      $region74: #{rw_gnn_forward.2} parent=71 // pred_check_branch
        %1128 = sbr.rel (%p1126) target = $region76
      $region75: #{rw_gnn_forward.2} parent=71 // pred_region
        %p1129 = scmp.lt.s32.totalorder %s21, 2
        %s1130 = scalar_select %p1129, %s21, 2
        %s1131 = smul.addr %s1130, 4
        %s1132 = scalar_lea.vmem %s9, %s1131
      $region76: #{rw_gnn_forward.2} parent=71 // pred_fallthru
        _
    $region72: #{rw_gnn_forward.2} parent=5 // pred_fallthru
      _
  $region6: #{rw_gnn_forward.2} parent=0 // loop_footer
    %s19 = sadd.s32 1, %s15
  $region7: #{rw_gnn_forward.2} parent=0 // loop_footer_branch
    %14 = sbr.rel target = $region3
  $region8: #{rw_gnn_forward.2} parent=0 // loop_exit
    _

</llo_original>
